<compile_context>
chip_gen: v6e
topology: v6e:2x2x1
jax: 0.10.0
libtpu: 0.0.40
codegen_flags: <defaults>
</compile_context>

<pallas_src>
import functools

import numpy as np
import jax
import jax.numpy as jnp
from jax.experimental import pallas as pl
from jax.experimental.pallas import tpu as pltpu


def _dilate_conv_kernel(x_ref, w_ref, b_ref, rc_ref, o_ref, *, d, H, W, Cin, Cout, N):
    """Single-invocation kernel (no grid).

    x_ref : (N, Cin, H*W)    input, spatial flattened onto lanes
    w_ref : (9, Cout, Cin)   weights, tap-major
    b_ref : (Cout, 1)        bias
    rc_ref: (2, N*H*W) int32 per-lane (row, col) position inside the image
    o_ref : (N, Cout, H*W)   output
    """
    HW = H * W
    L = N * HW

    # Lay the N batch images side by side on the lane axis; up-cast to f32 once.
    x = jnp.concatenate([x_ref[n] for n in range(N)], axis=-1).astype(jnp.float32)
    row = rc_ref[0:1, :]          # (1, L) int32, row index within the image
    col = rc_ref[1:2, :]          # (1, L) int32, col index within the image

    acc = None
    for ky in range(3):
        for kx in range(3):
            dy, dx = (ky - 1) * d, (kx - 1) * d
            off = dy * W + dx                      # tap offset in flat coordinates
            shift = (-off) % L                     # want shifted[q] == x[q + off]
            shifted = x if shift == 0 else pltpu.roll(x, shift, axis=1)

            # Zero-padding mask: only the comparisons that can actually fail.
            conds = []
            if dy > 0:
                conds.append(row < H - dy)
            elif dy < 0:
                conds.append(row >= -dy)
            if dx > 0:
                conds.append(col < W - dx)
            elif dx < 0:
                conds.append(col >= -dx)

            if conds:
                valid = conds[0]
                for extra in conds[1:]:
                    valid = jnp.logical_and(valid, extra)
                patch = shifted * jnp.where(valid, 1.0, 0.0)   # (Cin, L)
            else:
                patch = shifted                                # centre tap: no mask

            # (Cout, Cin) @ (Cin, L) on the MXU, f32 accumulation.
            w_t = w_ref[ky * 3 + kx].astype(jnp.float32)       # (Cout, Cin)
            contrib = jnp.dot(w_t, patch, preferred_element_type=jnp.float32)
            acc = contrib if acc is None else acc + contrib

    acc = acc + b_ref[...].astype(jnp.float32)                 # bias folded in once

    # Unstack the batch blocks from the lane axis: aligned, lane-dense stores.
    for n in range(N):
        o_ref[n] = acc[:, n * HW:(n + 1) * HW].astype(o_ref.dtype)


def dilate_conv(x_nchw, weight_oihw, bias, d_rate):
    """DilateConv forward.  x: (N, Cin, H, W) -> (N, Cout, H, W)."""
    N, Cin, H, W = x_nchw.shape
    Cout = weight_oihw.shape[0]
    d = int(d_rate)
    HW = H * W
    L = N * HW

    # Glue: free reshapes of activations only (no transposes).
    x_flat = x_nchw.reshape(N, Cin, HW)
    # (O, I, 3, 3) -> (9, O, I), tap-major: w9[ky*3+kx, o, i] = weight[o, i, ky, kx].
    w9 = jnp.transpose(weight_oihw, (2, 3, 0, 1)).reshape(9, Cout, Cin)
    b2d = bias.reshape(Cout, 1)

    # Tiny per-lane (row, col) index map, tiled over the N batch blocks that sit
    # side by side on the lane axis inside the kernel.  Replaces v1's (9, H*W) f32
    # mask array (which was larger than the input itself).
    pos = np.arange(HW, dtype=np.int32)
    rc = jnp.asarray(np.tile(np.stack([pos // W, pos % W]), (1, N)))   # (2, L) int32
    assert rc.shape == (2, L)

    kernel = functools.partial(_dilate_conv_kernel, d=d, H=H, W=W,
                               Cin=Cin, Cout=Cout, N=N)

    vmem = pl.BlockSpec(memory_space=pltpu.MemorySpace.VMEM)
    out_flat = pl.pallas_call(
        kernel,
        out_shape=jax.ShapeDtypeStruct((N, Cout, HW), x_nchw.dtype),
        in_specs=[vmem, vmem, vmem, vmem],
        out_specs=vmem,
    )(x_flat, w9, b2d, rc)

    return out_flat.reshape(N, Cout, H, W)  # free reshape back to NCHW


if __name__ == "__main__":
    # DilateConv(d_rate=2, in_ch=4, out_ch=8)
    d_rate, in_ch, out_ch = 2, 4, 8
    N, H, W = 2, 16, 16

    key = jax.random.PRNGKey(0)
    k_x, k_w, k_b = jax.random.split(key, 3)

    x = jax.random.normal(k_x, (N, in_ch, H, W), dtype=jnp.float32)
    # Deterministic synthetic parameters (PyTorch Conv2d weight shape: (out, in, 3, 3)).
    fan_in = in_ch * 3 * 3
    bound = 1.0 / (fan_in ** 0.5)
    weight = jax.random.uniform(k_w, (out_ch, in_ch, 3, 3), jnp.float32, -bound, bound)
    bias = jax.random.uniform(k_b, (out_ch,), jnp.float32, -bound, bound)

    out = dilate_conv(x, weight, bias, d_rate)
    out = jax.block_until_ready(out)

    # Silent correctness check against XLA's reference dilated conv.
    ref = jax.lax.conv_general_dilated(
        x, weight,
        window_strides=(1, 1),
        padding=((d_rate, d_rate), (d_rate, d_rate)),
        rhs_dilation=(d_rate, d_rate),
        dimension_numbers=("NCHW", "OIHW", "NCHW"),
    ) + bias[None, :, None, None]
    assert out.shape == (N, out_ch, H, W)
    assert jnp.allclose(out, ref, atol=1e-4, rtol=1e-4)

    print("KERNEL_OK")
</pallas_src>

<mosaic_0001>
module attributes {stable_mosaic.version = 11 : i64} {
  func.func @_dilate_conv_kernel(%arg0: memref<2x4x256xf32, #tpu.memory_space<vmem>>, %arg1: memref<9x8x4xf32, #tpu.memory_space<vmem>>, %arg2: memref<8x1xf32, #tpu.memory_space<vmem>>, %arg3: memref<2x512xi32, #tpu.memory_space<vmem>>, %arg4: memref<2x8x256xf32, #tpu.memory_space<vmem>>) attributes {dimension_semantics = [], scalar_prefetch = 0 : i64, scratch_operands = 0 : i64, tpu.core_type = #tpu.core_type<tc>} {
    %c0 = arith.constant 0 : index
    %c0_0 = arith.constant 0 : index
    %c0_1 = arith.constant 0 : index
    %0 = vector.load %arg0[%c0, %c0_0, %c0_1] : memref<2x4x256xf32, #tpu.memory_space<vmem>>, vector<1x4x256xf32>
    %1 = vector.shape_cast %0 : vector<1x4x256xf32> to vector<4x256xf32>
    %c1 = arith.constant 1 : index
    %c0_2 = arith.constant 0 : index
    %c0_3 = arith.constant 0 : index
    %2 = vector.load %arg0[%c1, %c0_2, %c0_3] : memref<2x4x256xf32, #tpu.memory_space<vmem>>, vector<1x4x256xf32>
    %3 = vector.shape_cast %2 : vector<1x4x256xf32> to vector<4x256xf32>
    %4 = tpu.concatenate %1, %3 in 1 : vector<4x256xf32>, vector<4x256xf32> -> vector<4x512xf32>
    %c0_4 = arith.constant 0 : index
    %c0_5 = arith.constant 0 : index
    %5 = vector.load %arg3[%c0_4, %c0_5] : memref<2x512xi32, #tpu.memory_space<vmem>>, vector<1x512xi32>
    %c1_6 = arith.constant 1 : index
    %c0_7 = arith.constant 0 : index
    %6 = vector.load %arg3[%c1_6, %c0_7] : memref<2x512xi32, #tpu.memory_space<vmem>>, vector<1x512xi32>
    %c34_i32 = arith.constant 34 : i32
    %7 = tpu.dynamic_rotate %4 by %c34_i32 dim 1 : vector<4x512xf32>, i32 -> vector<4x512xf32>
    %c2_i32 = arith.constant 2 : i32
    %8 = vector.broadcast %c2_i32 : i32 to vector<1x512xi32>
    %9 = arith.cmpi sge, %5, %8 : vector<1x512xi32>
    %c2_i32_8 = arith.constant 2 : i32
    %10 = vector.broadcast %c2_i32_8 : i32 to vector<1x512xi32>
    %11 = arith.cmpi sge, %6, %10 : vector<1x512xi32>
    %12 = arith.andi %9, %11 : vector<1x512xi1>
    %cst = arith.constant 1.000000e+00 : f32
    %cst_9 = arith.constant 0.000000e+00 : f32
    %13 = vector.broadcast %cst : f32 to vector<1x512xf32>
    %14 = vector.broadcast %cst_9 : f32 to vector<1x512xf32>
    %15 = arith.select %12, %13, %14 : vector<1x512xi1>, vector<1x512xf32>
    %16 = vector.broadcast %15 : vector<1x512xf32> to vector<4x512xf32>
    %17 = arith.mulf %7, %16 : vector<4x512xf32>
    %c0_10 = arith.constant 0 : index
    %c0_11 = arith.constant 0 : index
    %c0_12 = arith.constant 0 : index
    %18 = vector.load %arg1[%c0_10, %c0_11, %c0_12] : memref<9x8x4xf32, #tpu.memory_space<vmem>>, vector<1x8x4xf32>
    %19 = vector.shape_cast %18 : vector<1x8x4xf32> to vector<8x4xf32>
    %cst_13 = arith.constant dense<0.000000e+00> : vector<8x512xf32>
    %20 = tpu.matmul %19, %17, %cst_13 {dimension_numbers = #tpu.dot_dimension_numbers<[1], [0], [0], [1], [0, 0, 1, 1], [], []>} : vector<8x4xf32>, vector<4x512xf32>, vector<8x512xf32> -> vector<8x512xf32>
    %c32_i32 = arith.constant 32 : i32
    %21 = tpu.dynamic_rotate %4 by %c32_i32 dim 1 : vector<4x512xf32>, i32 -> vector<4x512xf32>
    %c2_i32_14 = arith.constant 2 : i32
    %22 = vector.broadcast %c2_i32_14 : i32 to vector<1x512xi32>
    %23 = arith.cmpi sge, %5, %22 : vector<1x512xi32>
    %cst_15 = arith.constant 1.000000e+00 : f32
    %cst_16 = arith.constant 0.000000e+00 : f32
    %24 = vector.broadcast %cst_15 : f32 to vector<1x512xf32>
    %25 = vector.broadcast %cst_16 : f32 to vector<1x512xf32>
    %26 = arith.select %23, %24, %25 : vector<1x512xi1>, vector<1x512xf32>
    %27 = vector.broadcast %26 : vector<1x512xf32> to vector<4x512xf32>
    %28 = arith.mulf %21, %27 : vector<4x512xf32>
    %c1_17 = arith.constant 1 : index
    %c0_18 = arith.constant 0 : index
    %c0_19 = arith.constant 0 : index
    %29 = vector.load %arg1[%c1_17, %c0_18, %c0_19] : memref<9x8x4xf32, #tpu.memory_space<vmem>>, vector<1x8x4xf32>
    %30 = vector.shape_cast %29 : vector<1x8x4xf32> to vector<8x4xf32>
    %cst_20 = arith.constant dense<0.000000e+00> : vector<8x512xf32>
    %31 = tpu.matmul %30, %28, %cst_20 {dimension_numbers = #tpu.dot_dimension_numbers<[1], [0], [0], [1], [0, 0, 1, 1], [], []>} : vector<8x4xf32>, vector<4x512xf32>, vector<8x512xf32> -> vector<8x512xf32>
    %32 = arith.addf %20, %31 : vector<8x512xf32>
    %c30_i32 = arith.constant 30 : i32
    %33 = tpu.dynamic_rotate %4 by %c30_i32 dim 1 : vector<4x512xf32>, i32 -> vector<4x512xf32>
    %c2_i32_21 = arith.constant 2 : i32
    %34 = vector.broadcast %c2_i32_21 : i32 to vector<1x512xi32>
    %35 = arith.cmpi sge, %5, %34 : vector<1x512xi32>
    %c14_i32 = arith.constant 14 : i32
    %36 = vector.broadcast %c14_i32 : i32 to vector<1x512xi32>
    %37 = arith.cmpi slt, %6, %36 : vector<1x512xi32>
    %38 = arith.andi %35, %37 : vector<1x512xi1>
    %cst_22 = arith.constant 1.000000e+00 : f32
    %cst_23 = arith.constant 0.000000e+00 : f32
    %39 = vector.broadcast %cst_22 : f32 to vector<1x512xf32>
    %40 = vector.broadcast %cst_23 : f32 to vector<1x512xf32>
    %41 = arith.select %38, %39, %40 : vector<1x512xi1>, vector<1x512xf32>
    %42 = vector.broadcast %41 : vector<1x512xf32> to vector<4x512xf32>
    %43 = arith.mulf %33, %42 : vector<4x512xf32>
    %c2 = arith.constant 2 : index
    %c0_24 = arith.constant 0 : index
    %c0_25 = arith.constant 0 : index
    %44 = vector.load %arg1[%c2, %c0_24, %c0_25] : memref<9x8x4xf32, #tpu.memory_space<vmem>>, vector<1x8x4xf32>
    %45 = vector.shape_cast %44 : vector<1x8x4xf32> to vector<8x4xf32>
    %cst_26 = arith.constant dense<0.000000e+00> : vector<8x512xf32>
    %46 = tpu.matmul %45, %43, %cst_26 {dimension_numbers = #tpu.dot_dimension_numbers<[1], [0], [0], [1], [0, 0, 1, 1], [], []>} : vector<8x4xf32>, vector<4x512xf32>, vector<8x512xf32> -> vector<8x512xf32>
    %47 = arith.addf %32, %46 : vector<8x512xf32>
    %c2_i32_27 = arith.constant 2 : i32
    %48 = tpu.dynamic_rotate %4 by %c2_i32_27 dim 1 : vector<4x512xf32>, i32 -> vector<4x512xf32>
    %c2_i32_28 = arith.constant 2 : i32
    %49 = vector.broadcast %c2_i32_28 : i32 to vector<1x512xi32>
    %50 = arith.cmpi sge, %6, %49 : vector<1x512xi32>
    %cst_29 = arith.constant 1.000000e+00 : f32
    %cst_30 = arith.constant 0.000000e+00 : f32
    %51 = vector.broadcast %cst_29 : f32 to vector<1x512xf32>
    %52 = vector.broadcast %cst_30 : f32 to vector<1x512xf32>
    %53 = arith.select %50, %51, %52 : vector<1x512xi1>, vector<1x512xf32>
    %54 = vector.broadcast %53 : vector<1x512xf32> to vector<4x512xf32>
    %55 = arith.mulf %48, %54 : vector<4x512xf32>
    %c3 = arith.constant 3 : index
    %c0_31 = arith.constant 0 : index
    %c0_32 = arith.constant 0 : index
    %56 = vector.load %arg1[%c3, %c0_31, %c0_32] : memref<9x8x4xf32, #tpu.memory_space<vmem>>, vector<1x8x4xf32>
    %57 = vector.shape_cast %56 : vector<1x8x4xf32> to vector<8x4xf32>
    %cst_33 = arith.constant dense<0.000000e+00> : vector<8x512xf32>
    %58 = tpu.matmul %57, %55, %cst_33 {dimension_numbers = #tpu.dot_dimension_numbers<[1], [0], [0], [1], [0, 0, 1, 1], [], []>} : vector<8x4xf32>, vector<4x512xf32>, vector<8x512xf32> -> vector<8x512xf32>
    %59 = arith.addf %47, %58 : vector<8x512xf32>
    %c4 = arith.constant 4 : index
    %c0_34 = arith.constant 0 : index
    %c0_35 = arith.constant 0 : index
    %60 = vector.load %arg1[%c4, %c0_34, %c0_35] : memref<9x8x4xf32, #tpu.memory_space<vmem>>, vector<1x8x4xf32>
    %61 = vector.shape_cast %60 : vector<1x8x4xf32> to vector<8x4xf32>
    %cst_36 = arith.constant dense<0.000000e+00> : vector<8x512xf32>
    %62 = tpu.matmul %61, %4, %cst_36 {dimension_numbers = #tpu.dot_dimension_numbers<[1], [0], [0], [1], [0, 0, 1, 1], [], []>} : vector<8x4xf32>, vector<4x512xf32>, vector<8x512xf32> -> vector<8x512xf32>
    %63 = arith.addf %59, %62 : vector<8x512xf32>
    %c510_i32 = arith.constant 510 : i32
    %64 = tpu.dynamic_rotate %4 by %c510_i32 dim 1 : vector<4x512xf32>, i32 -> vector<4x512xf32>
    %c14_i32_37 = arith.constant 14 : i32
    %65 = vector.broadcast %c14_i32_37 : i32 to vector<1x512xi32>
    %66 = arith.cmpi slt, %6, %65 : vector<1x512xi32>
    %cst_38 = arith.constant 1.000000e+00 : f32
    %cst_39 = arith.constant 0.000000e+00 : f32
    %67 = vector.broadcast %cst_38 : f32 to vector<1x512xf32>
    %68 = vector.broadcast %cst_39 : f32 to vector<1x512xf32>
    %69 = arith.select %66, %67, %68 : vector<1x512xi1>, vector<1x512xf32>
    %70 = vector.broadcast %69 : vector<1x512xf32> to vector<4x512xf32>
    %71 = arith.mulf %64, %70 : vector<4x512xf32>
    %c5 = arith.constant 5 : index
    %c0_40 = arith.constant 0 : index
    %c0_41 = arith.constant 0 : index
    %72 = vector.load %arg1[%c5, %c0_40, %c0_41] : memref<9x8x4xf32, #tpu.memory_space<vmem>>, vector<1x8x4xf32>
    %73 = vector.shape_cast %72 : vector<1x8x4xf32> to vector<8x4xf32>
    %cst_42 = arith.constant dense<0.000000e+00> : vector<8x512xf32>
    %74 = tpu.matmul %73, %71, %cst_42 {dimension_numbers = #tpu.dot_dimension_numbers<[1], [0], [0], [1], [0, 0, 1, 1], [], []>} : vector<8x4xf32>, vector<4x512xf32>, vector<8x512xf32> -> vector<8x512xf32>
    %75 = arith.addf %63, %74 : vector<8x512xf32>
    %c482_i32 = arith.constant 482 : i32
    %76 = tpu.dynamic_rotate %4 by %c482_i32 dim 1 : vector<4x512xf32>, i32 -> vector<4x512xf32>
    %c14_i32_43 = arith.constant 14 : i32
    %77 = vector.broadcast %c14_i32_43 : i32 to vector<1x512xi32>
    %78 = arith.cmpi slt, %5, %77 : vector<1x512xi32>
    %c2_i32_44 = arith.constant 2 : i32
    %79 = vector.broadcast %c2_i32_44 : i32 to vector<1x512xi32>
    %80 = arith.cmpi sge, %6, %79 : vector<1x512xi32>
    %81 = arith.andi %78, %80 : vector<1x512xi1>
    %cst_45 = arith.constant 1.000000e+00 : f32
    %cst_46 = arith.constant 0.000000e+00 : f32
    %82 = vector.broadcast %cst_45 : f32 to vector<1x512xf32>
    %83 = vector.broadcast %cst_46 : f32 to vector<1x512xf32>
    %84 = arith.select %81, %82, %83 : vector<1x512xi1>, vector<1x512xf32>
    %85 = vector.broadcast %84 : vector<1x512xf32> to vector<4x512xf32>
    %86 = arith.mulf %76, %85 : vector<4x512xf32>
    %c6 = arith.constant 6 : index
    %c0_47 = arith.constant 0 : index
    %c0_48 = arith.constant 0 : index
    %87 = vector.load %arg1[%c6, %c0_47, %c0_48] : memref<9x8x4xf32, #tpu.memory_space<vmem>>, vector<1x8x4xf32>
    %88 = vector.shape_cast %87 : vector<1x8x4xf32> to vector<8x4xf32>
    %cst_49 = arith.constant dense<0.000000e+00> : vector<8x512xf32>
    %89 = tpu.matmul %88, %86, %cst_49 {dimension_numbers = #tpu.dot_dimension_numbers<[1], [0], [0], [1], [0, 0, 1, 1], [], []>} : vector<8x4xf32>, vector<4x512xf32>, vector<8x512xf32> -> vector<8x512xf32>
    %90 = arith.addf %75, %89 : vector<8x512xf32>
    %c480_i32 = arith.constant 480 : i32
    %91 = tpu.dynamic_rotate %4 by %c480_i32 dim 1 : vector<4x512xf32>, i32 -> vector<4x512xf32>
    %c14_i32_50 = arith.constant 14 : i32
    %92 = vector.broadcast %c14_i32_50 : i32 to vector<1x512xi32>
    %93 = arith.cmpi slt, %5, %92 : vector<1x512xi32>
    %cst_51 = arith.constant 1.000000e+00 : f32
    %cst_52 = arith.constant 0.000000e+00 : f32
    %94 = vector.broadcast %cst_51 : f32 to vector<1x512xf32>
    %95 = vector.broadcast %cst_52 : f32 to vector<1x512xf32>
    %96 = arith.select %93, %94, %95 : vector<1x512xi1>, vector<1x512xf32>
    %97 = vector.broadcast %96 : vector<1x512xf32> to vector<4x512xf32>
    %98 = arith.mulf %91, %97 : vector<4x512xf32>
    %c7 = arith.constant 7 : index
    %c0_53 = arith.constant 0 : index
    %c0_54 = arith.constant 0 : index
    %99 = vector.load %arg1[%c7, %c0_53, %c0_54] : memref<9x8x4xf32, #tpu.memory_space<vmem>>, vector<1x8x4xf32>
    %100 = vector.shape_cast %99 : vector<1x8x4xf32> to vector<8x4xf32>
    %cst_55 = arith.constant dense<0.000000e+00> : vector<8x512xf32>
    %101 = tpu.matmul %100, %98, %cst_55 {dimension_numbers = #tpu.dot_dimension_numbers<[1], [0], [0], [1], [0, 0, 1, 1], [], []>} : vector<8x4xf32>, vector<4x512xf32>, vector<8x512xf32> -> vector<8x512xf32>
    %102 = arith.addf %90, %101 : vector<8x512xf32>
    %c478_i32 = arith.constant 478 : i32
    %103 = tpu.dynamic_rotate %4 by %c478_i32 dim 1 : vector<4x512xf32>, i32 -> vector<4x512xf32>
    %c14_i32_56 = arith.constant 14 : i32
    %104 = vector.broadcast %c14_i32_56 : i32 to vector<1x512xi32>
    %105 = arith.cmpi slt, %5, %104 : vector<1x512xi32>
    %c14_i32_57 = arith.constant 14 : i32
    %106 = vector.broadcast %c14_i32_57 : i32 to vector<1x512xi32>
    %107 = arith.cmpi slt, %6, %106 : vector<1x512xi32>
    %108 = arith.andi %105, %107 : vector<1x512xi1>
    %cst_58 = arith.constant 1.000000e+00 : f32
    %cst_59 = arith.constant 0.000000e+00 : f32
    %109 = vector.broadcast %cst_58 : f32 to vector<1x512xf32>
    %110 = vector.broadcast %cst_59 : f32 to vector<1x512xf32>
    %111 = arith.select %108, %109, %110 : vector<1x512xi1>, vector<1x512xf32>
    %112 = vector.broadcast %111 : vector<1x512xf32> to vector<4x512xf32>
    %113 = arith.mulf %103, %112 : vector<4x512xf32>
    %c8 = arith.constant 8 : index
    %c0_60 = arith.constant 0 : index
    %c0_61 = arith.constant 0 : index
    %114 = vector.load %arg1[%c8, %c0_60, %c0_61] : memref<9x8x4xf32, #tpu.memory_space<vmem>>, vector<1x8x4xf32>
    %115 = vector.shape_cast %114 : vector<1x8x4xf32> to vector<8x4xf32>
    %cst_62 = arith.constant dense<0.000000e+00> : vector<8x512xf32>
    %116 = tpu.matmul %115, %113, %cst_62 {dimension_numbers = #tpu.dot_dimension_numbers<[1], [0], [0], [1], [0, 0, 1, 1], [], []>} : vector<8x4xf32>, vector<4x512xf32>, vector<8x512xf32> -> vector<8x512xf32>
    %117 = arith.addf %102, %116 : vector<8x512xf32>
    %c0_63 = arith.constant 0 : index
    %c0_64 = arith.constant 0 : index
    %118 = vector.load %arg2[%c0_63, %c0_64] : memref<8x1xf32, #tpu.memory_space<vmem>>, vector<8x1xf32>
    %119 = vector.broadcast %118 : vector<8x1xf32> to vector<8x512xf32>
    %120 = arith.addf %117, %119 : vector<8x512xf32>
    %121 = vector.extract_strided_slice %120 {offsets = [0, 0], sizes = [8, 256], strides = [1, 1]} : vector<8x512xf32> to vector<8x256xf32>
    %c0_65 = arith.constant 0 : index
    %c0_66 = arith.constant 0 : index
    %c0_67 = arith.constant 0 : index
    %122 = vector.load %arg4[%c0_65, %c0_66, %c0_67] : memref<2x8x256xf32, #tpu.memory_space<vmem>>, vector<1x8x256xf32>
    %123 = vector.shape_cast %122 : vector<1x8x256xf32> to vector<8x256xf32>
    %124 = vector.shape_cast %121 : vector<8x256xf32> to vector<1x8x256xf32>
    tpu.vector_store %arg4[%c0_65, %c0_66, %c0_67], %124 {strides = array<i32>} : memref<2x8x256xf32, #tpu.memory_space<vmem>>, vector<1x8x256xf32>,
    %125 = vector.extract_strided_slice %120 {offsets = [0, 256], sizes = [8, 256], strides = [1, 1]} : vector<8x512xf32> to vector<8x256xf32>
    %c1_68 = arith.constant 1 : index
    %c0_69 = arith.constant 0 : index
    %c0_70 = arith.constant 0 : index
    %126 = vector.load %arg4[%c1_68, %c0_69, %c0_70] : memref<2x8x256xf32, #tpu.memory_space<vmem>>, vector<1x8x256xf32>
    %127 = vector.shape_cast %126 : vector<1x8x256xf32> to vector<8x256xf32>
    %128 = vector.shape_cast %125 : vector<8x256xf32> to vector<1x8x256xf32>
    tpu.vector_store %arg4[%c1_68, %c0_69, %c0_70], %128 {strides = array<i32>} : memref<2x8x256xf32, #tpu.memory_space<vmem>>, vector<1x8x256xf32>,
    return
  }
}

</mosaic_0001>

<llo_original>
// kernel: tpu_custom_call.1
$region0: #{tpu_custom_call.1}
  #allocation0 [shape = 'u32[]', space=smem, size = 0x4, offset = 0x4, fixed_abs, tag = 'smem constant byte address 0x4 - core index']
  #allocation1 [shape = 'u32[144,128]{1,0:T(1,128)}', space=vmem, size = 0x12000, scoped, tag = 'internal scratch']
  %s0 = inlined_call_operand.vmem [shape: f32[2,4,256], index: 0, kind: input, shape index: {}]
  %s1 = inlined_call_operand.vmem [shape: f32[9,8,4], index: 1, kind: input, shape index: {}]
  %s2 = inlined_call_operand.vmem [shape: f32[8,1], index: 2, kind: input, shape index: {}]
  %s3 = inlined_call_operand.vmem [shape: s32[2,512], index: 3, kind: input, shape index: {}]
  %s4 = inlined_call_operand.hbm [shape: f32[2,8,256], index: 4, kind: output, shape index: {}]
  %s5 = sld [smem:[#allocation0]]
  $region26: #{tpu_custom_call.1} parent=0
    _
  %s7 = ssub.s32 1, %s5
  %s8 = scalar_select 0, %s7, %s5
  $region1: #{tpu_custom_call.1} parent=0
    #allocation2 [shape = 'u8[16384]{0}', space=vmem, size = 0x4000, scoped, tag = 'output window, operand 0, single buffered']
    #allocation3 [shape = 's32[1]{0}', space=sflag, size = 0x4, scoped, tag = 'scoped memory for tpu_custom_call.1']
    %9 = vsyncpa [#allocation3], 0
    // Predicated region
    $region2: #{tpu_custom_call.1} parent=1 // pred_check
      _
    $region3: #{tpu_custom_call.1} parent=1 // pred_check_branch
      %11 = sbr.rel (0) target = $region5
    $region4: #{tpu_custom_call.1} parent=1 // pred_region
      _
    $region5: #{tpu_custom_call.1} parent=1 // pred_fallthru
      _
    // Predicated region
    $region6: #{tpu_custom_call.1} parent=1 // pred_check
      _
    $region7: #{tpu_custom_call.1} parent=1 // pred_check_branch
      %13 = sbr.rel (0) target = $region9
    $region8: #{tpu_custom_call.1} parent=1 // pred_region
      _
    $region9: #{tpu_custom_call.1} parent=1 // pred_fallthru
      _
    // Predicated region
    $region10: #{tpu_custom_call.1} parent=1 // pred_check
      _
    $region11: #{tpu_custom_call.1} parent=1 // pred_check_branch
      %15 = sbr.rel (0) target = $region13
    $region12: #{tpu_custom_call.1} parent=1 // pred_region
      _
    $region13: #{tpu_custom_call.1} parent=1 // pred_fallthru
      _
    // Predicated region
    $region14: #{tpu_custom_call.1} parent=1 // pred_check
      _
    $region15: #{tpu_custom_call.1} parent=1 // pred_check_branch
      %17 = sbr.rel (0) target = $region17
    $region16: #{tpu_custom_call.1} parent=1 // pred_region
      _
    $region17: #{tpu_custom_call.1} parent=1 // pred_fallthru
      _
    %v18 = vld [vmem:[%s0] sm:$0xff]
    %s19 = scalar_lea.vmem %s0, 8
    %v20 = vld [vmem:[%s19] sm:$0xff]
    %v22 = vcombine.high %v18, %v18
    %v25 = vcombine.high %v20, %v20
    %v27 = vld [vmem:[%s3] ss:$2 sm:$0xf]
    %s28 = scalar_lea.vmem %s3, 1
    %v29 = vld [vmem:[%s28] ss:$2 sm:$0xf]
    %30 = vrot.lane.b32.xlu0 %v18, 34
    %v31 = vpop.permute.xlu0 %30
    %32 = vrot.lane.b32.xlu0 %v22, 34
    %v33 = vpop.permute.xlu0 %32
    %34 = vrot.lane.b32.xlu0 %v20, 34
    %v35 = vpop.permute.xlu0 %34
    %36 = vrot.lane.b32.xlu0 %v25, 34
    %v37 = vpop.permute.xlu0 %36
    %v38 = vlaneseq
    %v39 = vand.u32 %v38, 127
    %vm40 = vcmp.lt.s32.totalorder %v39, 34
    %v41 = vsel %vm40, %v35, %v37
    %v42 = vsel %vm40, %v33, %v35
    %v43 = vsel %vm40, %v31, %v33
    %v44 = vsel %vm40, %v37, %v31
    %vm45 = vcmp.ge.s32.totalorder %v27, 2
    %vm46 = vcmp.ge.s32.totalorder %v29, 2
    %vm47 = vmand %vm45, %vm46
    %v48 = vsel %vm47, 1.0, 0.0
    %v50 = vlaneseq
    %v51 = vshrl.u32 %v50, 7
    %v52 = vsub.s32 0, %v51
    %v53 = vrot.slane %v48, %v52
    %v54 = vlaneseq
    %v55 = vshrl.u32 %v54, 7
    %v56 = vsub.s32 1, %v55
    %v57 = vrot.slane %v48, %v56
    %v58 = vlaneseq
    %v59 = vshrl.u32 %v58, 7
    %v60 = vsub.s32 2, %v59
    %v61 = vrot.slane %v48, %v60
    %v62 = vlaneseq
    %v63 = vshrl.u32 %v62, 7
    %v64 = vsub.s32 3, %v63
    %v65 = vrot.slane %v48, %v64
    %v70 = vmul.f32 %v44, %v53
    %v71 = vmul.f32 %v43, %v57
    %v72 = vmul.f32 %v42, %v61
    %v73 = vmul.f32 %v41, %v65
    %v74 = vld [vmem:[%s1] sm:$0xff]
    %75 = vrot.lane.b32.xlu0 %v18, 32
    %v76 = vpop.permute.xlu0 %75
    %77 = vrot.lane.b32.xlu0 %v22, 32
    %v78 = vpop.permute.xlu0 %77
    %79 = vrot.lane.b32.xlu0 %v20, 32
    %v80 = vpop.permute.xlu0 %79
    %81 = vrot.lane.b32.xlu0 %v25, 32
    %v82 = vpop.permute.xlu0 %81
    %vm83 = vcmp.lt.s32.totalorder %v39, 32
    %v84 = vsel %vm83, %v80, %v82
    %v85 = vsel %vm83, %v78, %v80
    %v86 = vsel %vm83, %v76, %v78
    %v87 = vsel %vm83, %v82, %v76
    %v88 = vsel %vm45, 1.0, 0.0
    %v90 = vlaneseq
    %v91 = vshrl.u32 %v90, 7
    %v92 = vsub.s32 0, %v91
    %v93 = vrot.slane %v88, %v92
    %v94 = vlaneseq
    %v95 = vshrl.u32 %v94, 7
    %v96 = vsub.s32 1, %v95
    %v97 = vrot.slane %v88, %v96
    %v98 = vlaneseq
    %v99 = vshrl.u32 %v98, 7
    %v100 = vsub.s32 2, %v99
    %v101 = vrot.slane %v88, %v100
    %v102 = vlaneseq
    %v103 = vshrl.u32 %v102, 7
    %v104 = vsub.s32 3, %v103
    %v105 = vrot.slane %v88, %v104
    %v110 = vmul.f32 %v87, %v93
    %v111 = vmul.f32 %v86, %v97
    %v112 = vmul.f32 %v85, %v101
    %v113 = vmul.f32 %v84, %v105
    %s114 = scalar_lea.vmem %s1, 8
    %v115 = vld [vmem:[%s114] sm:$0xff]
    %vm116 = vcmask 31744
    %v118 = vsel %vm116, %v115, 0
    %vm120 = vcmask 1043456
    %v122 = vsel %vm120, %v110, 0
    %v125 = vsel %vm120, %v111, 0
    %v128 = vsel %vm120, %v112, 0
    %v131 = vsel %vm120, %v113, 0
    %133 = vmatprep.subr.mxu0 0.0
    %134 = vmatpush1.msra.mxu0 0.0
    %135 = vmatprep.subr.mxu0 0.0
    %136 = vmatpush1.msra.mxu0 0.0
    %137 = vmatprep.subr.mxu0 0.0
    %138 = vmatpush1.msra.mxu0 0.0
    %139 = vmatprep.subr.mxu0 0.0
    %140 = vmatpush1.msra.mxu0 0.0
    %141 = vmatprep.subr.mxu0 0.0
    %142 = vmatpush1.msra.mxu0 0.0
    %143 = vmatprep.subr.mxu0 0.0
    %144 = vmatpush1.msra.mxu0 0.0
    %145 = vmatprep.subr.mxu0 0.0
    %146 = vmatpush1.msra.mxu0 0.0
    %147 = vmatprep.subr.mxu0 0.0
    %148 = vmatpush1.msra.mxu0 0.0
    %149 = vmatprep.subr.mxu0 0.0
    %150 = vmatpush1.msra.mxu0 0.0
    %151 = vmatprep.subr.mxu0 0.0
    %152 = vmatpush1.msra.mxu0 0.0
    %153 = vmatprep.subr.mxu0 0.0
    %154 = vmatpush1.msra.mxu0 0.0
    %155 = vmatprep.subr.mxu0 0.0
    %156 = vmatpush1.msra.mxu0 0.0
    %157 = vmatprep.subr.mxu0 0.0
    %158 = vmatpush1.msra.mxu0 0.0
    %159 = vmatprep.subr.mxu0 0.0
    %160 = vmatpush1.msra.mxu0 0.0
    %161 = vmatprep.subr.mxu0 0.0
    %162 = vmatpush1.msra.mxu0 0.0
    %163 = vmatprep.subr.mxu0 %v125
    %164 = vmatpush1.msra.mxu0 %v122
    %165 = vmatprep.subr.mxu0 0.0
    %166 = vmatpush2.msra.mxu0 0.0
    %167 = vmatprep.subr.mxu0 0.0
    %168 = vmatpush2.msra.mxu0 0.0
    %169 = vmatprep.subr.mxu0 0.0
    %170 = vmatpush2.msra.mxu0 0.0
    %171 = vmatprep.subr.mxu0 0.0
    %172 = vmatpush2.msra.mxu0 0.0
    %173 = vmatprep.subr.mxu0 0.0
    %174 = vmatpush2.msra.mxu0 0.0
    %175 = vmatprep.subr.mxu0 0.0
    %176 = vmatpush2.msra.mxu0 0.0
    %177 = vmatprep.subr.mxu0 0.0
    %178 = vmatpush2.msra.mxu0 0.0
    %179 = vmatprep.subr.mxu0 0.0
    %180 = vmatpush2.msra.mxu0 0.0
    %181 = vmatprep.subr.mxu0 0.0
    %182 = vmatpush2.msra.mxu0 0.0
    %183 = vmatprep.subr.mxu0 0.0
    %184 = vmatpush2.msra.mxu0 0.0
    %185 = vmatprep.subr.mxu0 0.0
    %186 = vmatpush2.msra.mxu0 0.0
    %187 = vmatprep.subr.mxu0 0.0
    %188 = vmatpush2.msra.mxu0 0.0
    %189 = vmatprep.subr.mxu0 0.0
    %190 = vmatpush2.msra.mxu0 0.0
    %191 = vmatprep.subr.mxu0 0.0
    %192 = vmatpush2.msra.mxu0 0.0
    %193 = vmatprep.subr.mxu0 0.0
    %194 = vmatpush2.msra.mxu0 0.0
    %195 = vmatprep.subr.mxu0 0.0
    %196 = vmatpush2.msra.mxu0 0.0
    %197 = vmatprep.mubr.f32.mxu0 0.0
    %198 = vmatmul.mubr.f32.gmra.mxu0 %v118
    %v199 = vpop.f32.mrf.mxu0
    %v200 = vadd.f32 0.0, %v199
    %v201 = vpop.f32.mrf.mxu0
    %v202 = vadd.f32 0.0, %v201
    %203 = vdwg.mxu0
    %204 = vmatprep.subr.mxu0 0.0
    %205 = vmatpush1.msra.mxu0 0.0
    %206 = vmatprep.subr.mxu0 0.0
    %207 = vmatpush1.msra.mxu0 0.0
    %208 = vmatprep.subr.mxu0 0.0
    %209 = vmatpush1.msra.mxu0 0.0
    %210 = vmatprep.subr.mxu0 0.0
    %211 = vmatpush1.msra.mxu0 0.0
    %212 = vmatprep.subr.mxu0 0.0
    %213 = vmatpush1.msra.mxu0 0.0
    %214 = vmatprep.subr.mxu0 0.0
    %215 = vmatpush1.msra.mxu0 0.0
    %216 = vmatprep.subr.mxu0 0.0
    %217 = vmatpush1.msra.mxu0 0.0
    %218 = vmatprep.subr.mxu0 0.0
    %219 = vmatpush1.msra.mxu0 0.0
    %220 = vmatprep.subr.mxu0 0.0
    %221 = vmatpush1.msra.mxu0 0.0
    %222 = vmatprep.subr.mxu0 0.0
    %223 = vmatpush1.msra.mxu0 0.0
    %224 = vmatprep.subr.mxu0 0.0
    %225 = vmatpush1.msra.mxu0 0.0
    %226 = vmatprep.subr.mxu0 0.0
    %227 = vmatpush1.msra.mxu0 0.0
    %228 = vmatprep.subr.mxu0 0.0
    %229 = vmatpush1.msra.mxu0 0.0
    %230 = vmatprep.subr.mxu0 0.0
    %231 = vmatpush1.msra.mxu0 0.0
    %232 = vmatprep.subr.mxu0 0.0
    %233 = vmatpush1.msra.mxu0 0.0
    %234 = vmatprep.subr.mxu0 %v131
    %235 = vmatpush1.msra.mxu0 %v128
    %236 = vmatprep.subr.mxu0 0.0
    %237 = vmatpush2.msra.mxu0 0.0
    %238 = vmatprep.subr.mxu0 0.0
    %239 = vmatpush2.msra.mxu0 0.0
    %240 = vmatprep.subr.mxu0 0.0
    %241 = vmatpush2.msra.mxu0 0.0
    %242 = vmatprep.subr.mxu0 0.0
    %243 = vmatpush2.msra.mxu0 0.0
    %244 = vmatprep.subr.mxu0 0.0
    %245 = vmatpush2.msra.mxu0 0.0
    %246 = vmatprep.subr.mxu0 0.0
    %247 = vmatpush2.msra.mxu0 0.0
    %248 = vmatprep.subr.mxu0 0.0
    %249 = vmatpush2.msra.mxu0 0.0
    %250 = vmatprep.subr.mxu0 0.0
    %251 = vmatpush2.msra.mxu0 0.0
    %252 = vmatprep.subr.mxu0 0.0
    %253 = vmatpush2.msra.mxu0 0.0
    %254 = vmatprep.subr.mxu0 0.0
    %255 = vmatpush2.msra.mxu0 0.0
    %256 = vmatprep.subr.mxu0 0.0
    %257 = vmatpush2.msra.mxu0 0.0
    %258 = vmatprep.subr.mxu0 0.0
    %259 = vmatpush2.msra.mxu0 0.0
    %260 = vmatprep.subr.mxu0 0.0
    %261 = vmatpush2.msra.mxu0 0.0
    %262 = vmatprep.subr.mxu0 0.0
    %263 = vmatpush2.msra.mxu0 0.0
    %264 = vmatprep.subr.mxu0 0.0
    %265 = vmatpush2.msra.mxu0 0.0
    %266 = vmatprep.subr.mxu0 0.0
    %267 = vmatpush2.msra.mxu0 0.0
    %268 = vmatprep.mubr.f32.mxu0 0.0
    %269 = vmatmul.mubr.f32.gmra.mxu0 %v118
    %v270 = vpop.f32.mrf.mxu0
    %v271 = vadd.f32 0.0, %v270
    %v272 = vpop.f32.mrf.mxu0
    %v273 = vadd.f32 0.0, %v272
    %274 = vdwg.mxu0
    %v276 = vsel %vm116, %v74, 0
    %v279 = vsel %vm120, %v70, 0
    %v282 = vsel %vm120, %v71, 0
    %v285 = vsel %vm120, %v72, 0
    %v288 = vsel %vm120, %v73, 0
    %290 = vmatprep.subr.mxu0 0.0
    %291 = vmatpush1.msra.mxu0 0.0
    %292 = vmatprep.subr.mxu0 0.0
    %293 = vmatpush1.msra.mxu0 0.0
    %294 = vmatprep.subr.mxu0 0.0
    %295 = vmatpush1.msra.mxu0 0.0
    %296 = vmatprep.subr.mxu0 0.0
    %297 = vmatpush1.msra.mxu0 0.0
    %298 = vmatprep.subr.mxu0 0.0
    %299 = vmatpush1.msra.mxu0 0.0
    %300 = vmatprep.subr.mxu0 0.0
    %301 = vmatpush1.msra.mxu0 0.0
    %302 = vmatprep.subr.mxu0 0.0
    %303 = vmatpush1.msra.mxu0 0.0
    %304 = vmatprep.subr.mxu0 0.0
    %305 = vmatpush1.msra.mxu0 0.0
    %306 = vmatprep.subr.mxu0 0.0
    %307 = vmatpush1.msra.mxu0 0.0
    %308 = vmatprep.subr.mxu0 0.0
    %309 = vmatpush1.msra.mxu0 0.0
    %310 = vmatprep.subr.mxu0 0.0
    %311 = vmatpush1.msra.mxu0 0.0
    %312 = vmatprep.subr.mxu0 0.0
    %313 = vmatpush1.msra.mxu0 0.0
    %314 = vmatprep.subr.mxu0 0.0
    %315 = vmatpush1.msra.mxu0 0.0
    %316 = vmatprep.subr.mxu0 0.0
    %317 = vmatpush1.msra.mxu0 0.0
    %318 = vmatprep.subr.mxu0 0.0
    %319 = vmatpush1.msra.mxu0 0.0
    %320 = vmatprep.subr.mxu0 %v282
    %321 = vmatpush1.msra.mxu0 %v279
    %322 = vmatprep.subr.mxu0 0.0
    %323 = vmatpush2.msra.mxu0 0.0
    %324 = vmatprep.subr.mxu0 0.0
    %325 = vmatpush2.msra.mxu0 0.0
    %326 = vmatprep.subr.mxu0 0.0
    %327 = vmatpush2.msra.mxu0 0.0
    %328 = vmatprep.subr.mxu0 0.0
    %329 = vmatpush2.msra.mxu0 0.0
    %330 = vmatprep.subr.mxu0 0.0
    %331 = vmatpush2.msra.mxu0 0.0
    %332 = vmatprep.subr.mxu0 0.0
    %333 = vmatpush2.msra.mxu0 0.0
    %334 = vmatprep.subr.mxu0 0.0
    %335 = vmatpush2.msra.mxu0 0.0
    %336 = vmatprep.subr.mxu0 0.0
    %337 = vmatpush2.msra.mxu0 0.0
    %338 = vmatprep.subr.mxu0 0.0
    %339 = vmatpush2.msra.mxu0 0.0
    %340 = vmatprep.subr.mxu0 0.0
    %341 = vmatpush2.msra.mxu0 0.0
    %342 = vmatprep.subr.mxu0 0.0
    %343 = vmatpush2.msra.mxu0 0.0
    %344 = vmatprep.subr.mxu0 0.0
    %345 = vmatpush2.msra.mxu0 0.0
    %346 = vmatprep.subr.mxu0 0.0
    %347 = vmatpush2.msra.mxu0 0.0
    %348 = vmatprep.subr.mxu0 0.0
    %349 = vmatpush2.msra.mxu0 0.0
    %350 = vmatprep.subr.mxu0 0.0
    %351 = vmatpush2.msra.mxu0 0.0
    %352 = vmatprep.subr.mxu0 0.0
    %353 = vmatpush2.msra.mxu0 0.0
    %354 = vmatprep.mubr.f32.mxu0 0.0
    %355 = vmatmul.mubr.f32.gmra.mxu0 %v276
    %v356 = vpop.f32.mrf.mxu0
    %v357 = vadd.f32 %v200, %v356
    %v358 = vpop.f32.mrf.mxu0
    %v359 = vadd.f32 %v202, %v358
    %360 = vdwg.mxu0
    %361 = vmatprep.subr.mxu0 0.0
    %362 = vmatpush1.msra.mxu0 0.0
    %363 = vmatprep.subr.mxu0 0.0
    %364 = vmatpush1.msra.mxu0 0.0
    %365 = vmatprep.subr.mxu0 0.0
    %366 = vmatpush1.msra.mxu0 0.0
    %367 = vmatprep.subr.mxu0 0.0
    %368 = vmatpush1.msra.mxu0 0.0
    %369 = vmatprep.subr.mxu0 0.0
    %370 = vmatpush1.msra.mxu0 0.0
    %371 = vmatprep.subr.mxu0 0.0
    %372 = vmatpush1.msra.mxu0 0.0
    %373 = vmatprep.subr.mxu0 0.0
    %374 = vmatpush1.msra.mxu0 0.0
    %375 = vmatprep.subr.mxu0 0.0
    %376 = vmatpush1.msra.mxu0 0.0
    %377 = vmatprep.subr.mxu0 0.0
    %378 = vmatpush1.msra.mxu0 0.0
    %379 = vmatprep.subr.mxu0 0.0
    %380 = vmatpush1.msra.mxu0 0.0
    %381 = vmatprep.subr.mxu0 0.0
    %382 = vmatpush1.msra.mxu0 0.0
    %383 = vmatprep.subr.mxu0 0.0
    %384 = vmatpush1.msra.mxu0 0.0
    %385 = vmatprep.subr.mxu0 0.0
    %386 = vmatpush1.msra.mxu0 0.0
    %387 = vmatprep.subr.mxu0 0.0
    %388 = vmatpush1.msra.mxu0 0.0
    %389 = vmatprep.subr.mxu0 0.0
    %390 = vmatpush1.msra.mxu0 0.0
    %391 = vmatprep.subr.mxu0 %v288
    %392 = vmatpush1.msra.mxu0 %v285
    %393 = vmatprep.subr.mxu0 0.0
    %394 = vmatpush2.msra.mxu0 0.0
    %395 = vmatprep.subr.mxu0 0.0
    %396 = vmatpush2.msra.mxu0 0.0
    %397 = vmatprep.subr.mxu0 0.0
    %398 = vmatpush2.msra.mxu0 0.0
    %399 = vmatprep.subr.mxu0 0.0
    %400 = vmatpush2.msra.mxu0 0.0
    %401 = vmatprep.subr.mxu0 0.0
    %402 = vmatpush2.msra.mxu0 0.0
    %403 = vmatprep.subr.mxu0 0.0
    %404 = vmatpush2.msra.mxu0 0.0
    %405 = vmatprep.subr.mxu0 0.0
    %406 = vmatpush2.msra.mxu0 0.0
    %407 = vmatprep.subr.mxu0 0.0
    %408 = vmatpush2.msra.mxu0 0.0
    %409 = vmatprep.subr.mxu0 0.0
    %410 = vmatpush2.msra.mxu0 0.0
    %411 = vmatprep.subr.mxu0 0.0
    %412 = vmatpush2.msra.mxu0 0.0
    %413 = vmatprep.subr.mxu0 0.0
    %414 = vmatpush2.msra.mxu0 0.0
    %415 = vmatprep.subr.mxu0 0.0
    %416 = vmatpush2.msra.mxu0 0.0
    %417 = vmatprep.subr.mxu0 0.0
    %418 = vmatpush2.msra.mxu0 0.0
    %419 = vmatprep.subr.mxu0 0.0
    %420 = vmatpush2.msra.mxu0 0.0
    %421 = vmatprep.subr.mxu0 0.0
    %422 = vmatpush2.msra.mxu0 0.0
    %423 = vmatprep.subr.mxu0 0.0
    %424 = vmatpush2.msra.mxu0 0.0
    %425 = vmatprep.mubr.f32.mxu0 0.0
    %426 = vmatmul.mubr.f32.gmra.mxu0 %v276
    %v427 = vpop.f32.mrf.mxu0
    %v428 = vadd.f32 %v271, %v427
    %v429 = vpop.f32.mrf.mxu0
    %v430 = vadd.f32 %v273, %v429
    %431 = vdwg.mxu0
    %432 = vrot.lane.b32.xlu0 %v18, 30
    %v433 = vpop.permute.xlu0 %432
    %434 = vrot.lane.b32.xlu0 %v22, 30
    %v435 = vpop.permute.xlu0 %434
    %436 = vrot.lane.b32.xlu0 %v20, 30
    %v437 = vpop.permute.xlu0 %436
    %438 = vrot.lane.b32.xlu0 %v25, 30
    %v439 = vpop.permute.xlu0 %438
    %vm440 = vcmp.lt.s32.totalorder %v39, 30
    %v441 = vsel %vm440, %v437, %v439
    %v442 = vsel %vm440, %v435, %v437
    %v443 = vsel %vm440, %v433, %v435
    %v444 = vsel %vm440, %v439, %v433
    %vm445 = vcmp.lt.s32.totalorder %v29, 14
    %vm446 = vmand %vm45, %vm445
    %v447 = vsel %vm446, 1.0, 0.0
    %v449 = vlaneseq
    %v450 = vshrl.u32 %v449, 7
    %v451 = vsub.s32 0, %v450
    %v452 = vrot.slane %v447, %v451
    %v453 = vlaneseq
    %v454 = vshrl.u32 %v453, 7
    %v455 = vsub.s32 1, %v454
    %v456 = vrot.slane %v447, %v455
    %v457 = vlaneseq
    %v458 = vshrl.u32 %v457, 7
    %v459 = vsub.s32 2, %v458
    %v460 = vrot.slane %v447, %v459
    %v461 = vlaneseq
    %v462 = vshrl.u32 %v461, 7
    %v463 = vsub.s32 3, %v462
    %v464 = vrot.slane %v447, %v463
    %v469 = vmul.f32 %v444, %v452
    %v470 = vmul.f32 %v443, %v456
    %v471 = vmul.f32 %v442, %v460
    %v472 = vmul.f32 %v441, %v464
    %s473 = scalar_lea.vmem %s1, 16
    %v474 = vld [vmem:[%s473] sm:$0xff]
    %v476 = vsel %vm116, %v474, 0
    %v479 = vsel %vm120, %v469, 0
    %v482 = vsel %vm120, %v470, 0
    %v485 = vsel %vm120, %v471, 0
    %v488 = vsel %vm120, %v472, 0
    %490 = vmatprep.subr.mxu0 0.0
    %491 = vmatpush1.msra.mxu0 0.0
    %492 = vmatprep.subr.mxu0 0.0
    %493 = vmatpush1.msra.mxu0 0.0
    %494 = vmatprep.subr.mxu0 0.0
    %495 = vmatpush1.msra.mxu0 0.0
    %496 = vmatprep.subr.mxu0 0.0
    %497 = vmatpush1.msra.mxu0 0.0
    %498 = vmatprep.subr.mxu0 0.0
    %499 = vmatpush1.msra.mxu0 0.0
    %500 = vmatprep.subr.mxu0 0.0
    %501 = vmatpush1.msra.mxu0 0.0
    %502 = vmatprep.subr.mxu0 0.0
    %503 = vmatpush1.msra.mxu0 0.0
    %504 = vmatprep.subr.mxu0 0.0
    %505 = vmatpush1.msra.mxu0 0.0
    %506 = vmatprep.subr.mxu0 0.0
    %507 = vmatpush1.msra.mxu0 0.0
    %508 = vmatprep.subr.mxu0 0.0
    %509 = vmatpush1.msra.mxu0 0.0
    %510 = vmatprep.subr.mxu0 0.0
    %511 = vmatpush1.msra.mxu0 0.0
    %512 = vmatprep.subr.mxu0 0.0
    %513 = vmatpush1.msra.mxu0 0.0
    %514 = vmatprep.subr.mxu0 0.0
    %515 = vmatpush1.msra.mxu0 0.0
    %516 = vmatprep.subr.mxu0 0.0
    %517 = vmatpush1.msra.mxu0 0.0
    %518 = vmatprep.subr.mxu0 0.0
    %519 = vmatpush1.msra.mxu0 0.0
    %520 = vmatprep.subr.mxu0 %v482
    %521 = vmatpush1.msra.mxu0 %v479
    %522 = vmatprep.subr.mxu0 0.0
    %523 = vmatpush2.msra.mxu0 0.0
    %524 = vmatprep.subr.mxu0 0.0
    %525 = vmatpush2.msra.mxu0 0.0
    %526 = vmatprep.subr.mxu0 0.0
    %527 = vmatpush2.msra.mxu0 0.0
    %528 = vmatprep.subr.mxu0 0.0
    %529 = vmatpush2.msra.mxu0 0.0
    %530 = vmatprep.subr.mxu0 0.0
    %531 = vmatpush2.msra.mxu0 0.0
    %532 = vmatprep.subr.mxu0 0.0
    %533 = vmatpush2.msra.mxu0 0.0
    %534 = vmatprep.subr.mxu0 0.0
    %535 = vmatpush2.msra.mxu0 0.0
    %536 = vmatprep.subr.mxu0 0.0
    %537 = vmatpush2.msra.mxu0 0.0
    %538 = vmatprep.subr.mxu0 0.0
    %539 = vmatpush2.msra.mxu0 0.0
    %540 = vmatprep.subr.mxu0 0.0
    %541 = vmatpush2.msra.mxu0 0.0
    %542 = vmatprep.subr.mxu0 0.0
    %543 = vmatpush2.msra.mxu0 0.0
    %544 = vmatprep.subr.mxu0 0.0
    %545 = vmatpush2.msra.mxu0 0.0
    %546 = vmatprep.subr.mxu0 0.0
    %547 = vmatpush2.msra.mxu0 0.0
    %548 = vmatprep.subr.mxu0 0.0
    %549 = vmatpush2.msra.mxu0 0.0
    %550 = vmatprep.subr.mxu0 0.0
    %551 = vmatpush2.msra.mxu0 0.0
    %552 = vmatprep.subr.mxu0 0.0
    %553 = vmatpush2.msra.mxu0 0.0
    %554 = vmatprep.mubr.f32.mxu0 0.0
    %555 = vmatmul.mubr.f32.gmra.mxu0 %v476
    %v556 = vpop.f32.mrf.mxu0
    %v557 = vadd.f32 0.0, %v556
    %v558 = vpop.f32.mrf.mxu0
    %v559 = vadd.f32 0.0, %v558
    %560 = vdwg.mxu0
    %561 = vmatprep.subr.mxu0 0.0
    %562 = vmatpush1.msra.mxu0 0.0
    %563 = vmatprep.subr.mxu0 0.0
    %564 = vmatpush1.msra.mxu0 0.0
    %565 = vmatprep.subr.mxu0 0.0
    %566 = vmatpush1.msra.mxu0 0.0
    %567 = vmatprep.subr.mxu0 0.0
    %568 = vmatpush1.msra.mxu0 0.0
    %569 = vmatprep.subr.mxu0 0.0
    %570 = vmatpush1.msra.mxu0 0.0
    %571 = vmatprep.subr.mxu0 0.0
    %572 = vmatpush1.msra.mxu0 0.0
    %573 = vmatprep.subr.mxu0 0.0
    %574 = vmatpush1.msra.mxu0 0.0
    %575 = vmatprep.subr.mxu0 0.0
    %576 = vmatpush1.msra.mxu0 0.0
    %577 = vmatprep.subr.mxu0 0.0
    %578 = vmatpush1.msra.mxu0 0.0
    %579 = vmatprep.subr.mxu0 0.0
    %580 = vmatpush1.msra.mxu0 0.0
    %581 = vmatprep.subr.mxu0 0.0
    %582 = vmatpush1.msra.mxu0 0.0
    %583 = vmatprep.subr.mxu0 0.0
    %584 = vmatpush1.msra.mxu0 0.0
    %585 = vmatprep.subr.mxu0 0.0
    %586 = vmatpush1.msra.mxu0 0.0
    %587 = vmatprep.subr.mxu0 0.0
    %588 = vmatpush1.msra.mxu0 0.0
    %589 = vmatprep.subr.mxu0 0.0
    %590 = vmatpush1.msra.mxu0 0.0
    %591 = vmatprep.subr.mxu0 %v488
    %592 = vmatpush1.msra.mxu0 %v485
    %593 = vmatprep.subr.mxu0 0.0
    %594 = vmatpush2.msra.mxu0 0.0
    %595 = vmatprep.subr.mxu0 0.0
    %596 = vmatpush2.msra.mxu0 0.0
    %597 = vmatprep.subr.mxu0 0.0
    %598 = vmatpush2.msra.mxu0 0.0
    %599 = vmatprep.subr.mxu0 0.0
    %600 = vmatpush2.msra.mxu0 0.0
    %601 = vmatprep.subr.mxu0 0.0
    %602 = vmatpush2.msra.mxu0 0.0
    %603 = vmatprep.subr.mxu0 0.0
    %604 = vmatpush2.msra.mxu0 0.0
    %605 = vmatprep.subr.mxu0 0.0
    %606 = vmatpush2.msra.mxu0 0.0
    %607 = vmatprep.subr.mxu0 0.0
    %608 = vmatpush2.msra.mxu0 0.0
    %609 = vmatprep.subr.mxu0 0.0
    %610 = vmatpush2.msra.mxu0 0.0
    %611 = vmatprep.subr.mxu0 0.0
    %612 = vmatpush2.msra.mxu0 0.0
    %613 = vmatprep.subr.mxu0 0.0
    %614 = vmatpush2.msra.mxu0 0.0
    %615 = vmatprep.subr.mxu0 0.0
    %616 = vmatpush2.msra.mxu0 0.0
    %617 = vmatprep.subr.mxu0 0.0
    %618 = vmatpush2.msra.mxu0 0.0
    %619 = vmatprep.subr.mxu0 0.0
    %620 = vmatpush2.msra.mxu0 0.0
    %621 = vmatprep.subr.mxu0 0.0
    %622 = vmatpush2.msra.mxu0 0.0
    %623 = vmatprep.subr.mxu0 0.0
    %624 = vmatpush2.msra.mxu0 0.0
    %625 = vmatprep.mubr.f32.mxu0 0.0
    %626 = vmatmul.mubr.f32.gmra.mxu0 %v476
    %v627 = vpop.f32.mrf.mxu0
    %v628 = vadd.f32 0.0, %v627
    %v629 = vpop.f32.mrf.mxu0
    %v630 = vadd.f32 0.0, %v629
    %631 = vdwg.mxu0
    %v632 = vadd.f32 %v357, %v557
    %v633 = vadd.f32 %v359, %v559
    %v634 = vadd.f32 %v428, %v628
    %v635 = vadd.f32 %v430, %v630
    %636 = vrot.lane.b32.xlu0 %v18, 2
    %v637 = vpop.permute.xlu0 %636
    %638 = vrot.lane.b32.xlu0 %v22, 2
    %v639 = vpop.permute.xlu0 %638
    %640 = vrot.lane.b32.xlu0 %v20, 2
    %v641 = vpop.permute.xlu0 %640
    %642 = vrot.lane.b32.xlu0 %v25, 2
    %v643 = vpop.permute.xlu0 %642
    %vm644 = vcmp.lt.s32.totalorder %v39, 2
    %v645 = vsel %vm644, %v641, %v643
    %v646 = vsel %vm644, %v639, %v641
    %v647 = vsel %vm644, %v637, %v639
    %v648 = vsel %vm644, %v643, %v637
    %v649 = vsel %vm46, 1.0, 0.0
    %v651 = vlaneseq
    %v652 = vshrl.u32 %v651, 7
    %v653 = vsub.s32 0, %v652
    %v654 = vrot.slane %v649, %v653
    %v655 = vlaneseq
    %v656 = vshrl.u32 %v655, 7
    %v657 = vsub.s32 1, %v656
    %v658 = vrot.slane %v649, %v657
    %v659 = vlaneseq
    %v660 = vshrl.u32 %v659, 7
    %v661 = vsub.s32 2, %v660
    %v662 = vrot.slane %v649, %v661
    %v663 = vlaneseq
    %v664 = vshrl.u32 %v663, 7
    %v665 = vsub.s32 3, %v664
    %v666 = vrot.slane %v649, %v665
    %v671 = vmul.f32 %v648, %v654
    %v672 = vmul.f32 %v647, %v658
    %v673 = vmul.f32 %v646, %v662
    %v674 = vmul.f32 %v645, %v666
    %s675 = scalar_lea.vmem %s1, 24
    %v676 = vld [vmem:[%s675] sm:$0xff]
    %v678 = vsel %vm116, %v676, 0
    %v681 = vsel %vm120, %v671, 0
    %v684 = vsel %vm120, %v672, 0
    %v687 = vsel %vm120, %v673, 0
    %v690 = vsel %vm120, %v674, 0
    %692 = vmatprep.subr.mxu0 0.0
    %693 = vmatpush1.msra.mxu0 0.0
    %694 = vmatprep.subr.mxu0 0.0
    %695 = vmatpush1.msra.mxu0 0.0
    %696 = vmatprep.subr.mxu0 0.0
    %697 = vmatpush1.msra.mxu0 0.0
    %698 = vmatprep.subr.mxu0 0.0
    %699 = vmatpush1.msra.mxu0 0.0
    %700 = vmatprep.subr.mxu0 0.0
    %701 = vmatpush1.msra.mxu0 0.0
    %702 = vmatprep.subr.mxu0 0.0
    %703 = vmatpush1.msra.mxu0 0.0
    %704 = vmatprep.subr.mxu0 0.0
    %705 = vmatpush1.msra.mxu0 0.0
    %706 = vmatprep.subr.mxu0 0.0
    %707 = vmatpush1.msra.mxu0 0.0
    %708 = vmatprep.subr.mxu0 0.0
    %709 = vmatpush1.msra.mxu0 0.0
    %710 = vmatprep.subr.mxu0 0.0
    %711 = vmatpush1.msra.mxu0 0.0
    %712 = vmatprep.subr.mxu0 0.0
    %713 = vmatpush1.msra.mxu0 0.0
    %714 = vmatprep.subr.mxu0 0.0
    %715 = vmatpush1.msra.mxu0 0.0
    %716 = vmatprep.subr.mxu0 0.0
    %717 = vmatpush1.msra.mxu0 0.0
    %718 = vmatprep.subr.mxu0 0.0
    %719 = vmatpush1.msra.mxu0 0.0
    %720 = vmatprep.subr.mxu0 0.0
    %721 = vmatpush1.msra.mxu0 0.0
    %722 = vmatprep.subr.mxu0 %v684
    %723 = vmatpush1.msra.mxu0 %v681
    %724 = vmatprep.subr.mxu0 0.0
    %725 = vmatpush2.msra.mxu0 0.0
    %726 = vmatprep.subr.mxu0 0.0
    %727 = vmatpush2.msra.mxu0 0.0
    %728 = vmatprep.subr.mxu0 0.0
    %729 = vmatpush2.msra.mxu0 0.0
    %730 = vmatprep.subr.mxu0 0.0
    %731 = vmatpush2.msra.mxu0 0.0
    %732 = vmatprep.subr.mxu0 0.0
    %733 = vmatpush2.msra.mxu0 0.0
    %734 = vmatprep.subr.mxu0 0.0
    %735 = vmatpush2.msra.mxu0 0.0
    %736 = vmatprep.subr.mxu0 0.0
    %737 = vmatpush2.msra.mxu0 0.0
    %738 = vmatprep.subr.mxu0 0.0
    %739 = vmatpush2.msra.mxu0 0.0
    %740 = vmatprep.subr.mxu0 0.0
    %741 = vmatpush2.msra.mxu0 0.0
    %742 = vmatprep.subr.mxu0 0.0
    %743 = vmatpush2.msra.mxu0 0.0
    %744 = vmatprep.subr.mxu0 0.0
    %745 = vmatpush2.msra.mxu0 0.0
    %746 = vmatprep.subr.mxu0 0.0
    %747 = vmatpush2.msra.mxu0 0.0
    %748 = vmatprep.subr.mxu0 0.0
    %749 = vmatpush2.msra.mxu0 0.0
    %750 = vmatprep.subr.mxu0 0.0
    %751 = vmatpush2.msra.mxu0 0.0
    %752 = vmatprep.subr.mxu0 0.0
    %753 = vmatpush2.msra.mxu0 0.0
    %754 = vmatprep.subr.mxu0 0.0
    %755 = vmatpush2.msra.mxu0 0.0
    %756 = vmatprep.mubr.f32.mxu0 0.0
    %757 = vmatmul.mubr.f32.gmra.mxu0 %v678
    %v758 = vpop.f32.mrf.mxu0
    %v759 = vadd.f32 0.0, %v758
    %v760 = vpop.f32.mrf.mxu0
    %v761 = vadd.f32 0.0, %v760
    %762 = vdwg.mxu0
    %763 = vmatprep.subr.mxu0 0.0
    %764 = vmatpush1.msra.mxu0 0.0
    %765 = vmatprep.subr.mxu0 0.0
    %766 = vmatpush1.msra.mxu0 0.0
    %767 = vmatprep.subr.mxu0 0.0
    %768 = vmatpush1.msra.mxu0 0.0
    %769 = vmatprep.subr.mxu0 0.0
    %770 = vmatpush1.msra.mxu0 0.0
    %771 = vmatprep.subr.mxu0 0.0
    %772 = vmatpush1.msra.mxu0 0.0
    %773 = vmatprep.subr.mxu0 0.0
    %774 = vmatpush1.msra.mxu0 0.0
    %775 = vmatprep.subr.mxu0 0.0
    %776 = vmatpush1.msra.mxu0 0.0
    %777 = vmatprep.subr.mxu0 0.0
    %778 = vmatpush1.msra.mxu0 0.0
    %779 = vmatprep.subr.mxu0 0.0
    %780 = vmatpush1.msra.mxu0 0.0
    %781 = vmatprep.subr.mxu0 0.0
    %782 = vmatpush1.msra.mxu0 0.0
    %783 = vmatprep.subr.mxu0 0.0
    %784 = vmatpush1.msra.mxu0 0.0
    %785 = vmatprep.subr.mxu0 0.0
    %786 = vmatpush1.msra.mxu0 0.0
    %787 = vmatprep.subr.mxu0 0.0
    %788 = vmatpush1.msra.mxu0 0.0
    %789 = vmatprep.subr.mxu0 0.0
    %790 = vmatpush1.msra.mxu0 0.0
    %791 = vmatprep.subr.mxu0 0.0
    %792 = vmatpush1.msra.mxu0 0.0
    %793 = vmatprep.subr.mxu0 %v690
    %794 = vmatpush1.msra.mxu0 %v687
    %795 = vmatprep.subr.mxu0 0.0
    %796 = vmatpush2.msra.mxu0 0.0
    %797 = vmatprep.subr.mxu0 0.0
    %798 = vmatpush2.msra.mxu0 0.0
    %799 = vmatprep.subr.mxu0 0.0
    %800 = vmatpush2.msra.mxu0 0.0
    %801 = vmatprep.subr.mxu0 0.0
    %802 = vmatpush2.msra.mxu0 0.0
    %803 = vmatprep.subr.mxu0 0.0
    %804 = vmatpush2.msra.mxu0 0.0
    %805 = vmatprep.subr.mxu0 0.0
    %806 = vmatpush2.msra.mxu0 0.0
    %807 = vmatprep.subr.mxu0 0.0
    %808 = vmatpush2.msra.mxu0 0.0
    %809 = vmatprep.subr.mxu0 0.0
    %810 = vmatpush2.msra.mxu0 0.0
    %811 = vmatprep.subr.mxu0 0.0
    %812 = vmatpush2.msra.mxu0 0.0
    %813 = vmatprep.subr.mxu0 0.0
    %814 = vmatpush2.msra.mxu0 0.0
    %815 = vmatprep.subr.mxu0 0.0
    %816 = vmatpush2.msra.mxu0 0.0
    %817 = vmatprep.subr.mxu0 0.0
    %818 = vmatpush2.msra.mxu0 0.0
    %819 = vmatprep.subr.mxu0 0.0
    %820 = vmatpush2.msra.mxu0 0.0
    %821 = vmatprep.subr.mxu0 0.0
    %822 = vmatpush2.msra.mxu0 0.0
    %823 = vmatprep.subr.mxu0 0.0
    %824 = vmatpush2.msra.mxu0 0.0
    %825 = vmatprep.subr.mxu0 0.0
    %826 = vmatpush2.msra.mxu0 0.0
    %827 = vmatprep.mubr.f32.mxu0 0.0
    %828 = vmatmul.mubr.f32.gmra.mxu0 %v678
    %v829 = vpop.f32.mrf.mxu0
    %v830 = vadd.f32 0.0, %v829
    %v831 = vpop.f32.mrf.mxu0
    %v832 = vadd.f32 0.0, %v831
    %833 = vdwg.mxu0
    %v834 = vadd.f32 %v632, %v759
    %v835 = vadd.f32 %v633, %v761
    %v836 = vadd.f32 %v634, %v830
    %v837 = vadd.f32 %v635, %v832
    %s838 = scalar_lea.vmem %s1, 32
    %v839 = vld [vmem:[%s838] sm:$0xff]
    %v841 = vsel %vm116, %v839, 0
    %v843 = vsel %vm120, %v18, 0
    %v845 = vsel %vm120, %v22, 0
    %v847 = vsel %vm120, %v20, 0
    %v849 = vsel %vm120, %v25, 0
    %851 = vmatprep.subr.mxu0 0.0
    %852 = vmatpush1.msra.mxu0 0.0
    %853 = vmatprep.subr.mxu0 0.0
    %854 = vmatpush1.msra.mxu0 0.0
    %855 = vmatprep.subr.mxu0 0.0
    %856 = vmatpush1.msra.mxu0 0.0
    %857 = vmatprep.subr.mxu0 0.0
    %858 = vmatpush1.msra.mxu0 0.0
    %859 = vmatprep.subr.mxu0 0.0
    %860 = vmatpush1.msra.mxu0 0.0
    %861 = vmatprep.subr.mxu0 0.0
    %862 = vmatpush1.msra.mxu0 0.0
    %863 = vmatprep.subr.mxu0 0.0
    %864 = vmatpush1.msra.mxu0 0.0
    %865 = vmatprep.subr.mxu0 0.0
    %866 = vmatpush1.msra.mxu0 0.0
    %867 = vmatprep.subr.mxu0 0.0
    %868 = vmatpush1.msra.mxu0 0.0
    %869 = vmatprep.subr.mxu0 0.0
    %870 = vmatpush1.msra.mxu0 0.0
    %871 = vmatprep.subr.mxu0 0.0
    %872 = vmatpush1.msra.mxu0 0.0
    %873 = vmatprep.subr.mxu0 0.0
    %874 = vmatpush1.msra.mxu0 0.0
    %875 = vmatprep.subr.mxu0 0.0
    %876 = vmatpush1.msra.mxu0 0.0
    %877 = vmatprep.subr.mxu0 0.0
    %878 = vmatpush1.msra.mxu0 0.0
    %879 = vmatprep.subr.mxu0 0.0
    %880 = vmatpush1.msra.mxu0 0.0
    %881 = vmatprep.subr.mxu0 %v845
    %882 = vmatpush1.msra.mxu0 %v843
    %883 = vmatprep.subr.mxu0 0.0
    %884 = vmatpush2.msra.mxu0 0.0
    %885 = vmatprep.subr.mxu0 0.0
    %886 = vmatpush2.msra.mxu0 0.0
    %887 = vmatprep.subr.mxu0 0.0
    %888 = vmatpush2.msra.mxu0 0.0
    %889 = vmatprep.subr.mxu0 0.0
    %890 = vmatpush2.msra.mxu0 0.0
    %891 = vmatprep.subr.mxu0 0.0
    %892 = vmatpush2.msra.mxu0 0.0
    %893 = vmatprep.subr.mxu0 0.0
    %894 = vmatpush2.msra.mxu0 0.0
    %895 = vmatprep.subr.mxu0 0.0
    %896 = vmatpush2.msra.mxu0 0.0
    %897 = vmatprep.subr.mxu0 0.0
    %898 = vmatpush2.msra.mxu0 0.0
    %899 = vmatprep.subr.mxu0 0.0
    %900 = vmatpush2.msra.mxu0 0.0
    %901 = vmatprep.subr.mxu0 0.0
    %902 = vmatpush2.msra.mxu0 0.0
    %903 = vmatprep.subr.mxu0 0.0
    %904 = vmatpush2.msra.mxu0 0.0
    %905 = vmatprep.subr.mxu0 0.0
    %906 = vmatpush2.msra.mxu0 0.0
    %907 = vmatprep.subr.mxu0 0.0
    %908 = vmatpush2.msra.mxu0 0.0
    %909 = vmatprep.subr.mxu0 0.0
    %910 = vmatpush2.msra.mxu0 0.0
    %911 = vmatprep.subr.mxu0 0.0
    %912 = vmatpush2.msra.mxu0 0.0
    %913 = vmatprep.subr.mxu0 0.0
    %914 = vmatpush2.msra.mxu0 0.0
    %915 = vmatprep.mubr.f32.mxu0 0.0
    %916 = vmatmul.mubr.f32.gmra.mxu0 %v841
    %v917 = vpop.f32.mrf.mxu0
    %v918 = vadd.f32 0.0, %v917
    %v919 = vpop.f32.mrf.mxu0
    %v920 = vadd.f32 0.0, %v919
    %921 = vdwg.mxu0
    %922 = vmatprep.subr.mxu0 0.0
    %923 = vmatpush1.msra.mxu0 0.0
    %924 = vmatprep.subr.mxu0 0.0
    %925 = vmatpush1.msra.mxu0 0.0
    %926 = vmatprep.subr.mxu0 0.0
    %927 = vmatpush1.msra.mxu0 0.0
    %928 = vmatprep.subr.mxu0 0.0
    %929 = vmatpush1.msra.mxu0 0.0
    %930 = vmatprep.subr.mxu0 0.0
    %931 = vmatpush1.msra.mxu0 0.0
    %932 = vmatprep.subr.mxu0 0.0
    %933 = vmatpush1.msra.mxu0 0.0
    %934 = vmatprep.subr.mxu0 0.0
    %935 = vmatpush1.msra.mxu0 0.0
    %936 = vmatprep.subr.mxu0 0.0
    %937 = vmatpush1.msra.mxu0 0.0
    %938 = vmatprep.subr.mxu0 0.0
    %939 = vmatpush1.msra.mxu0 0.0
    %940 = vmatprep.subr.mxu0 0.0
    %941 = vmatpush1.msra.mxu0 0.0
    %942 = vmatprep.subr.mxu0 0.0
    %943 = vmatpush1.msra.mxu0 0.0
    %944 = vmatprep.subr.mxu0 0.0
    %945 = vmatpush1.msra.mxu0 0.0
    %946 = vmatprep.subr.mxu0 0.0
    %947 = vmatpush1.msra.mxu0 0.0
    %948 = vmatprep.subr.mxu0 0.0
    %949 = vmatpush1.msra.mxu0 0.0
    %950 = vmatprep.subr.mxu0 0.0
    %951 = vmatpush1.msra.mxu0 0.0
    %952 = vmatprep.subr.mxu0 %v849
    %953 = vmatpush1.msra.mxu0 %v847
    %954 = vmatprep.subr.mxu0 0.0
    %955 = vmatpush2.msra.mxu0 0.0
    %956 = vmatprep.subr.mxu0 0.0
    %957 = vmatpush2.msra.mxu0 0.0
    %958 = vmatprep.subr.mxu0 0.0
    %959 = vmatpush2.msra.mxu0 0.0
    %960 = vmatprep.subr.mxu0 0.0
    %961 = vmatpush2.msra.mxu0 0.0
    %962 = vmatprep.subr.mxu0 0.0
    %963 = vmatpush2.msra.mxu0 0.0
    %964 = vmatprep.subr.mxu0 0.0
    %965 = vmatpush2.msra.mxu0 0.0
    %966 = vmatprep.subr.mxu0 0.0
    %967 = vmatpush2.msra.mxu0 0.0
    %968 = vmatprep.subr.mxu0 0.0
    %969 = vmatpush2.msra.mxu0 0.0
    %970 = vmatprep.subr.mxu0 0.0
    %971 = vmatpush2.msra.mxu0 0.0
    %972 = vmatprep.subr.mxu0 0.0
    %973 = vmatpush2.msra.mxu0 0.0
    %974 = vmatprep.subr.mxu0 0.0
    %975 = vmatpush2.msra.mxu0 0.0
    %976 = vmatprep.subr.mxu0 0.0
    %977 = vmatpush2.msra.mxu0 0.0
    %978 = vmatprep.subr.mxu0 0.0
    %979 = vmatpush2.msra.mxu0 0.0
    %980 = vmatprep.subr.mxu0 0.0
    %981 = vmatpush2.msra.mxu0 0.0
    %982 = vmatprep.subr.mxu0 0.0
    %983 = vmatpush2.msra.mxu0 0.0
    %984 = vmatprep.subr.mxu0 0.0
    %985 = vmatpush2.msra.mxu0 0.0
    %986 = vmatprep.mubr.f32.mxu0 0.0
    %987 = vmatmul.mubr.f32.gmra.mxu0 %v841
    %v988 = vpop.f32.mrf.mxu0
    %v989 = vadd.f32 0.0, %v988
    %v990 = vpop.f32.mrf.mxu0
    %v991 = vadd.f32 0.0, %v990
    %992 = vdwg.mxu0
    %v993 = vadd.f32 %v834, %v918
    %v994 = vadd.f32 %v835, %v920
    %v995 = vadd.f32 %v836, %v989
    %v996 = vadd.f32 %v837, %v991
    %997 = vrot.lane.b32.xlu0 %v18, 126
    %v998 = vpop.permute.xlu0 %997
    %999 = vrot.lane.b32.xlu0 %v22, 126
    %v1000 = vpop.permute.xlu0 %999
    %1001 = vrot.lane.b32.xlu0 %v20, 126
    %v1002 = vpop.permute.xlu0 %1001
    %1003 = vrot.lane.b32.xlu0 %v25, 126
    %v1004 = vpop.permute.xlu0 %1003
    %vm1005 = vcmp.lt.s32.totalorder %v39, 126
    %v1006 = vsel %vm1005, %v1002, %v1004
    %v1007 = vsel %vm1005, %v1000, %v1002
    %v1008 = vsel %vm1005, %v998, %v1000
    %v1009 = vsel %vm1005, %v1004, %v998
    %v1010 = vsel %vm445, 1.0, 0.0
    %v1012 = vlaneseq
    %v1013 = vshrl.u32 %v1012, 7
    %v1014 = vsub.s32 0, %v1013
    %v1015 = vrot.slane %v1010, %v1014
    %v1016 = vlaneseq
    %v1017 = vshrl.u32 %v1016, 7
    %v1018 = vsub.s32 1, %v1017
    %v1019 = vrot.slane %v1010, %v1018
    %v1020 = vlaneseq
    %v1021 = vshrl.u32 %v1020, 7
    %v1022 = vsub.s32 2, %v1021
    %v1023 = vrot.slane %v1010, %v1022
    %v1024 = vlaneseq
    %v1025 = vshrl.u32 %v1024, 7
    %v1026 = vsub.s32 3, %v1025
    %v1027 = vrot.slane %v1010, %v1026
    %v1032 = vmul.f32 %v1008, %v1015
    %v1033 = vmul.f32 %v1007, %v1019
    %v1034 = vmul.f32 %v1006, %v1023
    %v1035 = vmul.f32 %v1009, %v1027
    %s1036 = scalar_lea.vmem %s1, 40
    %v1037 = vld [vmem:[%s1036] sm:$0xff]
    %v1039 = vsel %vm116, %v1037, 0
    %v1042 = vsel %vm120, %v1032, 0
    %v1045 = vsel %vm120, %v1033, 0
    %v1048 = vsel %vm120, %v1034, 0
    %v1051 = vsel %vm120, %v1035, 0
    %1053 = vmatprep.subr.mxu0 0.0
    %1054 = vmatpush1.msra.mxu0 0.0
    %1055 = vmatprep.subr.mxu0 0.0
    %1056 = vmatpush1.msra.mxu0 0.0
    %1057 = vmatprep.subr.mxu0 0.0
    %1058 = vmatpush1.msra.mxu0 0.0
    %1059 = vmatprep.subr.mxu0 0.0
    %1060 = vmatpush1.msra.mxu0 0.0
    %1061 = vmatprep.subr.mxu0 0.0
    %1062 = vmatpush1.msra.mxu0 0.0
    %1063 = vmatprep.subr.mxu0 0.0
    %1064 = vmatpush1.msra.mxu0 0.0
    %1065 = vmatprep.subr.mxu0 0.0
    %1066 = vmatpush1.msra.mxu0 0.0
    %1067 = vmatprep.subr.mxu0 0.0
    %1068 = vmatpush1.msra.mxu0 0.0
    %1069 = vmatprep.subr.mxu0 0.0
    %1070 = vmatpush1.msra.mxu0 0.0
    %1071 = vmatprep.subr.mxu0 0.0
    %1072 = vmatpush1.msra.mxu0 0.0
    %1073 = vmatprep.subr.mxu0 0.0
    %1074 = vmatpush1.msra.mxu0 0.0
    %1075 = vmatprep.subr.mxu0 0.0
    %1076 = vmatpush1.msra.mxu0 0.0
    %1077 = vmatprep.subr.mxu0 0.0
    %1078 = vmatpush1.msra.mxu0 0.0
    %1079 = vmatprep.subr.mxu0 0.0
    %1080 = vmatpush1.msra.mxu0 0.0
    %1081 = vmatprep.subr.mxu0 0.0
    %1082 = vmatpush1.msra.mxu0 0.0
    %1083 = vmatprep.subr.mxu0 %v1045
    %1084 = vmatpush1.msra.mxu0 %v1042
    %1085 = vmatprep.subr.mxu0 0.0
    %1086 = vmatpush2.msra.mxu0 0.0
    %1087 = vmatprep.subr.mxu0 0.0
    %1088 = vmatpush2.msra.mxu0 0.0
    %1089 = vmatprep.subr.mxu0 0.0
    %1090 = vmatpush2.msra.mxu0 0.0
    %1091 = vmatprep.subr.mxu0 0.0
    %1092 = vmatpush2.msra.mxu0 0.0
    %1093 = vmatprep.subr.mxu0 0.0
    %1094 = vmatpush2.msra.mxu0 0.0
    %1095 = vmatprep.subr.mxu0 0.0
    %1096 = vmatpush2.msra.mxu0 0.0
    %1097 = vmatprep.subr.mxu0 0.0
    %1098 = vmatpush2.msra.mxu0 0.0
    %1099 = vmatprep.subr.mxu0 0.0
    %1100 = vmatpush2.msra.mxu0 0.0
    %1101 = vmatprep.subr.mxu0 0.0
    %1102 = vmatpush2.msra.mxu0 0.0
    %1103 = vmatprep.subr.mxu0 0.0
    %1104 = vmatpush2.msra.mxu0 0.0
    %1105 = vmatprep.subr.mxu0 0.0
    %1106 = vmatpush2.msra.mxu0 0.0
    %1107 = vmatprep.subr.mxu0 0.0
    %1108 = vmatpush2.msra.mxu0 0.0
    %1109 = vmatprep.subr.mxu0 0.0
    %1110 = vmatpush2.msra.mxu0 0.0
    %1111 = vmatprep.subr.mxu0 0.0
    %1112 = vmatpush2.msra.mxu0 0.0
    %1113 = vmatprep.subr.mxu0 0.0
    %1114 = vmatpush2.msra.mxu0 0.0
    %1115 = vmatprep.subr.mxu0 0.0
    %1116 = vmatpush2.msra.mxu0 0.0
    %1117 = vmatprep.mubr.f32.mxu0 0.0
    %1118 = vmatmul.mubr.f32.gmra.mxu0 %v1039
    %v1119 = vpop.f32.mrf.mxu0
    %v1120 = vadd.f32 0.0, %v1119
    %v1121 = vpop.f32.mrf.mxu0
    %v1122 = vadd.f32 0.0, %v1121
    %1123 = vdwg.mxu0
    %1124 = vmatprep.subr.mxu0 0.0
    %1125 = vmatpush1.msra.mxu0 0.0
    %1126 = vmatprep.subr.mxu0 0.0
    %1127 = vmatpush1.msra.mxu0 0.0
    %1128 = vmatprep.subr.mxu0 0.0
    %1129 = vmatpush1.msra.mxu0 0.0
    %1130 = vmatprep.subr.mxu0 0.0
    %1131 = vmatpush1.msra.mxu0 0.0
    %1132 = vmatprep.subr.mxu0 0.0
    %1133 = vmatpush1.msra.mxu0 0.0
    %1134 = vmatprep.subr.mxu0 0.0
    %1135 = vmatpush1.msra.mxu0 0.0
    %1136 = vmatprep.subr.mxu0 0.0
    %1137 = vmatpush1.msra.mxu0 0.0
    %1138 = vmatprep.subr.mxu0 0.0
    %1139 = vmatpush1.msra.mxu0 0.0
    %1140 = vmatprep.subr.mxu0 0.0
    %1141 = vmatpush1.msra.mxu0 0.0
    %1142 = vmatprep.subr.mxu0 0.0
    %1143 = vmatpush1.msra.mxu0 0.0
    %1144 = vmatprep.subr.mxu0 0.0
    %1145 = vmatpush1.msra.mxu0 0.0
    %1146 = vmatprep.subr.mxu0 0.0
    %1147 = vmatpush1.msra.mxu0 0.0
    %1148 = vmatprep.subr.mxu0 0.0
    %1149 = vmatpush1.msra.mxu0 0.0
    %1150 = vmatprep.subr.mxu0 0.0
    %1151 = vmatpush1.msra.mxu0 0.0
    %1152 = vmatprep.subr.mxu0 0.0
    %1153 = vmatpush1.msra.mxu0 0.0
    %1154 = vmatprep.subr.mxu0 %v1051
    %1155 = vmatpush1.msra.mxu0 %v1048
    %1156 = vmatprep.subr.mxu0 0.0
    %1157 = vmatpush2.msra.mxu0 0.0
    %1158 = vmatprep.subr.mxu0 0.0
    %1159 = vmatpush2.msra.mxu0 0.0
    %1160 = vmatprep.subr.mxu0 0.0
    %1161 = vmatpush2.msra.mxu0 0.0
    %1162 = vmatprep.subr.mxu0 0.0
    %1163 = vmatpush2.msra.mxu0 0.0
    %1164 = vmatprep.subr.mxu0 0.0
    %1165 = vmatpush2.msra.mxu0 0.0
    %1166 = vmatprep.subr.mxu0 0.0
    %1167 = vmatpush2.msra.mxu0 0.0
    %1168 = vmatprep.subr.mxu0 0.0
    %1169 = vmatpush2.msra.mxu0 0.0
    %1170 = vmatprep.subr.mxu0 0.0
    %1171 = vmatpush2.msra.mxu0 0.0
    %1172 = vmatprep.subr.mxu0 0.0
    %1173 = vmatpush2.msra.mxu0 0.0
    %1174 = vmatprep.subr.mxu0 0.0
    %1175 = vmatpush2.msra.mxu0 0.0
    %1176 = vmatprep.subr.mxu0 0.0
    %1177 = vmatpush2.msra.mxu0 0.0
    %1178 = vmatprep.subr.mxu0 0.0
    %1179 = vmatpush2.msra.mxu0 0.0
    %1180 = vmatprep.subr.mxu0 0.0
    %1181 = vmatpush2.msra.mxu0 0.0
    %1182 = vmatprep.subr.mxu0 0.0
    %1183 = vmatpush2.msra.mxu0 0.0
    %1184 = vmatprep.subr.mxu0 0.0
    %1185 = vmatpush2.msra.mxu0 0.0
    %1186 = vmatprep.subr.mxu0 0.0
    %1187 = vmatpush2.msra.mxu0 0.0
    %1188 = vmatprep.mubr.f32.mxu0 0.0
    %1189 = vmatmul.mubr.f32.gmra.mxu0 %v1039
    %v1190 = vpop.f32.mrf.mxu0
    %v1191 = vadd.f32 0.0, %v1190
    %v1192 = vpop.f32.mrf.mxu0
    %v1193 = vadd.f32 0.0, %v1192
    %1194 = vdwg.mxu0
    %v1195 = vadd.f32 %v993, %v1120
    %v1196 = vadd.f32 %v994, %v1122
    %v1197 = vadd.f32 %v995, %v1191
    %v1198 = vadd.f32 %v996, %v1193
    %1199 = vrot.lane.b32.xlu0 %v18, 98
    %v1200 = vpop.permute.xlu0 %1199
    %1201 = vrot.lane.b32.xlu0 %v22, 98
    %v1202 = vpop.permute.xlu0 %1201
    %1203 = vrot.lane.b32.xlu0 %v20, 98
    %v1204 = vpop.permute.xlu0 %1203
    %1205 = vrot.lane.b32.xlu0 %v25, 98
    %v1206 = vpop.permute.xlu0 %1205
    %vm1207 = vcmp.lt.s32.totalorder %v39, 98
    %v1208 = vsel %vm1207, %v1204, %v1206
    %v1209 = vsel %vm1207, %v1202, %v1204
    %v1210 = vsel %vm1207, %v1200, %v1202
    %v1211 = vsel %vm1207, %v1206, %v1200
    %vm1212 = vcmp.lt.s32.totalorder %v27, 14
    %vm1213 = vmand %vm1212, %vm46
    %v1214 = vsel %vm1213, 1.0, 0.0
    %v1216 = vlaneseq
    %v1217 = vshrl.u32 %v1216, 7
    %v1218 = vsub.s32 0, %v1217
    %v1219 = vrot.slane %v1214, %v1218
    %v1220 = vlaneseq
    %v1221 = vshrl.u32 %v1220, 7
    %v1222 = vsub.s32 1, %v1221
    %v1223 = vrot.slane %v1214, %v1222
    %v1224 = vlaneseq
    %v1225 = vshrl.u32 %v1224, 7
    %v1226 = vsub.s32 2, %v1225
    %v1227 = vrot.slane %v1214, %v1226
    %v1228 = vlaneseq
    %v1229 = vshrl.u32 %v1228, 7
    %v1230 = vsub.s32 3, %v1229
    %v1231 = vrot.slane %v1214, %v1230
    %v1236 = vmul.f32 %v1210, %v1219
    %v1237 = vmul.f32 %v1209, %v1223
    %v1238 = vmul.f32 %v1208, %v1227
    %v1239 = vmul.f32 %v1211, %v1231
    %s1240 = scalar_lea.vmem %s1, 48
    %v1241 = vld [vmem:[%s1240] sm:$0xff]
    %v1243 = vsel %vm116, %v1241, 0
    %v1246 = vsel %vm120, %v1236, 0
    %v1249 = vsel %vm120, %v1237, 0
    %v1252 = vsel %vm120, %v1238, 0
    %v1255 = vsel %vm120, %v1239, 0
    %1257 = vmatprep.subr.mxu0 0.0
    %1258 = vmatpush1.msra.mxu0 0.0
    %1259 = vmatprep.subr.mxu0 0.0
    %1260 = vmatpush1.msra.mxu0 0.0
    %1261 = vmatprep.subr.mxu0 0.0
    %1262 = vmatpush1.msra.mxu0 0.0
    %1263 = vmatprep.subr.mxu0 0.0
    %1264 = vmatpush1.msra.mxu0 0.0
    %1265 = vmatprep.subr.mxu0 0.0
    %1266 = vmatpush1.msra.mxu0 0.0
    %1267 = vmatprep.subr.mxu0 0.0
    %1268 = vmatpush1.msra.mxu0 0.0
    %1269 = vmatprep.subr.mxu0 0.0
    %1270 = vmatpush1.msra.mxu0 0.0
    %1271 = vmatprep.subr.mxu0 0.0
    %1272 = vmatpush1.msra.mxu0 0.0
    %1273 = vmatprep.subr.mxu0 0.0
    %1274 = vmatpush1.msra.mxu0 0.0
    %1275 = vmatprep.subr.mxu0 0.0
    %1276 = vmatpush1.msra.mxu0 0.0
    %1277 = vmatprep.subr.mxu0 0.0
    %1278 = vmatpush1.msra.mxu0 0.0
    %1279 = vmatprep.subr.mxu0 0.0
    %1280 = vmatpush1.msra.mxu0 0.0
    %1281 = vmatprep.subr.mxu0 0.0
    %1282 = vmatpush1.msra.mxu0 0.0
    %1283 = vmatprep.subr.mxu0 0.0
    %1284 = vmatpush1.msra.mxu0 0.0
    %1285 = vmatprep.subr.mxu0 0.0
    %1286 = vmatpush1.msra.mxu0 0.0
    %1287 = vmatprep.subr.mxu0 %v1249
    %1288 = vmatpush1.msra.mxu0 %v1246
    %1289 = vmatprep.subr.mxu0 0.0
    %1290 = vmatpush2.msra.mxu0 0.0
    %1291 = vmatprep.subr.mxu0 0.0
    %1292 = vmatpush2.msra.mxu0 0.0
    %1293 = vmatprep.subr.mxu0 0.0
    %1294 = vmatpush2.msra.mxu0 0.0
    %1295 = vmatprep.subr.mxu0 0.0
    %1296 = vmatpush2.msra.mxu0 0.0
    %1297 = vmatprep.subr.mxu0 0.0
    %1298 = vmatpush2.msra.mxu0 0.0
    %1299 = vmatprep.subr.mxu0 0.0
    %1300 = vmatpush2.msra.mxu0 0.0
    %1301 = vmatprep.subr.mxu0 0.0
    %1302 = vmatpush2.msra.mxu0 0.0
    %1303 = vmatprep.subr.mxu0 0.0
    %1304 = vmatpush2.msra.mxu0 0.0
    %1305 = vmatprep.subr.mxu0 0.0
    %1306 = vmatpush2.msra.mxu0 0.0
    %1307 = vmatprep.subr.mxu0 0.0
    %1308 = vmatpush2.msra.mxu0 0.0
    %1309 = vmatprep.subr.mxu0 0.0
    %1310 = vmatpush2.msra.mxu0 0.0
    %1311 = vmatprep.subr.mxu0 0.0
    %1312 = vmatpush2.msra.mxu0 0.0
    %1313 = vmatprep.subr.mxu0 0.0
    %1314 = vmatpush2.msra.mxu0 0.0
    %1315 = vmatprep.subr.mxu0 0.0
    %1316 = vmatpush2.msra.mxu0 0.0
    %1317 = vmatprep.subr.mxu0 0.0
    %1318 = vmatpush2.msra.mxu0 0.0
    %1319 = vmatprep.subr.mxu0 0.0
    %1320 = vmatpush2.msra.mxu0 0.0
    %1321 = vmatprep.mubr.f32.mxu0 0.0
    %1322 = vmatmul.mubr.f32.gmra.mxu0 %v1243
    %v1323 = vpop.f32.mrf.mxu0
    %v1324 = vadd.f32 0.0, %v1323
    %v1325 = vpop.f32.mrf.mxu0
    %v1326 = vadd.f32 0.0, %v1325
    %1327 = vdwg.mxu0
    %1328 = vmatprep.subr.mxu0 0.0
    %1329 = vmatpush1.msra.mxu0 0.0
    %1330 = vmatprep.subr.mxu0 0.0
    %1331 = vmatpush1.msra.mxu0 0.0
    %1332 = vmatprep.subr.mxu0 0.0
    %1333 = vmatpush1.msra.mxu0 0.0
    %1334 = vmatprep.subr.mxu0 0.0
    %1335 = vmatpush1.msra.mxu0 0.0
    %1336 = vmatprep.subr.mxu0 0.0
    %1337 = vmatpush1.msra.mxu0 0.0
    %1338 = vmatprep.subr.mxu0 0.0
    %1339 = vmatpush1.msra.mxu0 0.0
    %1340 = vmatprep.subr.mxu0 0.0
    %1341 = vmatpush1.msra.mxu0 0.0
    %1342 = vmatprep.subr.mxu0 0.0
    %1343 = vmatpush1.msra.mxu0 0.0
    %1344 = vmatprep.subr.mxu0 0.0
    %1345 = vmatpush1.msra.mxu0 0.0
    %1346 = vmatprep.subr.mxu0 0.0
    %1347 = vmatpush1.msra.mxu0 0.0
    %1348 = vmatprep.subr.mxu0 0.0
    %1349 = vmatpush1.msra.mxu0 0.0
    %1350 = vmatprep.subr.mxu0 0.0
    %1351 = vmatpush1.msra.mxu0 0.0
    %1352 = vmatprep.subr.mxu0 0.0
    %1353 = vmatpush1.msra.mxu0 0.0
    %1354 = vmatprep.subr.mxu0 0.0
    %1355 = vmatpush1.msra.mxu0 0.0
    %1356 = vmatprep.subr.mxu0 0.0
    %1357 = vmatpush1.msra.mxu0 0.0
    %1358 = vmatprep.subr.mxu0 %v1255
    %1359 = vmatpush1.msra.mxu0 %v1252
    %1360 = vmatprep.subr.mxu0 0.0
    %1361 = vmatpush2.msra.mxu0 0.0
    %1362 = vmatprep.subr.mxu0 0.0
    %1363 = vmatpush2.msra.mxu0 0.0
    %1364 = vmatprep.subr.mxu0 0.0
    %1365 = vmatpush2.msra.mxu0 0.0
    %1366 = vmatprep.subr.mxu0 0.0
    %1367 = vmatpush2.msra.mxu0 0.0
    %1368 = vmatprep.subr.mxu0 0.0
    %1369 = vmatpush2.msra.mxu0 0.0
    %1370 = vmatprep.subr.mxu0 0.0
    %1371 = vmatpush2.msra.mxu0 0.0
    %1372 = vmatprep.subr.mxu0 0.0
    %1373 = vmatpush2.msra.mxu0 0.0
    %1374 = vmatprep.subr.mxu0 0.0
    %1375 = vmatpush2.msra.mxu0 0.0
    %1376 = vmatprep.subr.mxu0 0.0
    %1377 = vmatpush2.msra.mxu0 0.0
    %1378 = vmatprep.subr.mxu0 0.0
    %1379 = vmatpush2.msra.mxu0 0.0
    %1380 = vmatprep.subr.mxu0 0.0
    %1381 = vmatpush2.msra.mxu0 0.0
    %1382 = vmatprep.subr.mxu0 0.0
    %1383 = vmatpush2.msra.mxu0 0.0
    %1384 = vmatprep.subr.mxu0 0.0
    %1385 = vmatpush2.msra.mxu0 0.0
    %1386 = vmatprep.subr.mxu0 0.0
    %1387 = vmatpush2.msra.mxu0 0.0
    %1388 = vmatprep.subr.mxu0 0.0
    %1389 = vmatpush2.msra.mxu0 0.0
    %1390 = vmatprep.subr.mxu0 0.0
    %1391 = vmatpush2.msra.mxu0 0.0
    %1392 = vmatprep.mubr.f32.mxu0 0.0
    %1393 = vmatmul.mubr.f32.gmra.mxu0 %v1243
    %v1394 = vpop.f32.mrf.mxu0
    %v1395 = vadd.f32 0.0, %v1394
    %v1396 = vpop.f32.mrf.mxu0
    %v1397 = vadd.f32 0.0, %v1396
    %1398 = vdwg.mxu0
    %v1399 = vadd.f32 %v1195, %v1324
    %v1400 = vadd.f32 %v1196, %v1326
    %v1401 = vadd.f32 %v1197, %v1395
    %v1402 = vadd.f32 %v1198, %v1397
    %1403 = vrot.lane.b32.xlu0 %v18, 96
    %v1404 = vpop.permute.xlu0 %1403
    %1405 = vrot.lane.b32.xlu0 %v22, 96
    %v1406 = vpop.permute.xlu0 %1405
    %1407 = vrot.lane.b32.xlu0 %v20, 96
    %v1408 = vpop.permute.xlu0 %1407
    %1409 = vrot.lane.b32.xlu0 %v25, 96
    %v1410 = vpop.permute.xlu0 %1409
    %vm1411 = vcmp.lt.s32.totalorder %v39, 96
    %v1412 = vsel %vm1411, %v1408, %v1410
    %v1413 = vsel %vm1411, %v1406, %v1408
    %v1414 = vsel %vm1411, %v1404, %v1406
    %v1415 = vsel %vm1411, %v1410, %v1404
    %v1416 = vsel %vm1212, 1.0, 0.0
    %v1418 = vlaneseq
    %v1419 = vshrl.u32 %v1418, 7
    %v1420 = vsub.s32 0, %v1419
    %v1421 = vrot.slane %v1416, %v1420
    %v1422 = vlaneseq
    %v1423 = vshrl.u32 %v1422, 7
    %v1424 = vsub.s32 1, %v1423
    %v1425 = vrot.slane %v1416, %v1424
    %v1426 = vlaneseq
    %v1427 = vshrl.u32 %v1426, 7
    %v1428 = vsub.s32 2, %v1427
    %v1429 = vrot.slane %v1416, %v1428
    %v1430 = vlaneseq
    %v1431 = vshrl.u32 %v1430, 7
    %v1432 = vsub.s32 3, %v1431
    %v1433 = vrot.slane %v1416, %v1432
    %v1438 = vmul.f32 %v1414, %v1421
    %v1439 = vmul.f32 %v1413, %v1425
    %v1440 = vmul.f32 %v1412, %v1429
    %v1441 = vmul.f32 %v1415, %v1433
    %s1442 = scalar_lea.vmem %s1, 56
    %v1443 = vld [vmem:[%s1442] sm:$0xff]
    %v1445 = vsel %vm116, %v1443, 0
    %v1448 = vsel %vm120, %v1438, 0
    %v1451 = vsel %vm120, %v1439, 0
    %v1454 = vsel %vm120, %v1440, 0
    %v1457 = vsel %vm120, %v1441, 0
    %1459 = vmatprep.subr.mxu0 0.0
    %1460 = vmatpush1.msra.mxu0 0.0
    %1461 = vmatprep.subr.mxu0 0.0
    %1462 = vmatpush1.msra.mxu0 0.0
    %1463 = vmatprep.subr.mxu0 0.0
    %1464 = vmatpush1.msra.mxu0 0.0
    %1465 = vmatprep.subr.mxu0 0.0
    %1466 = vmatpush1.msra.mxu0 0.0
    %1467 = vmatprep.subr.mxu0 0.0
    %1468 = vmatpush1.msra.mxu0 0.0
    %1469 = vmatprep.subr.mxu0 0.0
    %1470 = vmatpush1.msra.mxu0 0.0
    %1471 = vmatprep.subr.mxu0 0.0
    %1472 = vmatpush1.msra.mxu0 0.0
    %1473 = vmatprep.subr.mxu0 0.0
    %1474 = vmatpush1.msra.mxu0 0.0
    %1475 = vmatprep.subr.mxu0 0.0
    %1476 = vmatpush1.msra.mxu0 0.0
    %1477 = vmatprep.subr.mxu0 0.0
    %1478 = vmatpush1.msra.mxu0 0.0
    %1479 = vmatprep.subr.mxu0 0.0
    %1480 = vmatpush1.msra.mxu0 0.0
    %1481 = vmatprep.subr.mxu0 0.0
    %1482 = vmatpush1.msra.mxu0 0.0
    %1483 = vmatprep.subr.mxu0 0.0
    %1484 = vmatpush1.msra.mxu0 0.0
    %1485 = vmatprep.subr.mxu0 0.0
    %1486 = vmatpush1.msra.mxu0 0.0
    %1487 = vmatprep.subr.mxu0 0.0
    %1488 = vmatpush1.msra.mxu0 0.0
    %1489 = vmatprep.subr.mxu0 %v1451
    %1490 = vmatpush1.msra.mxu0 %v1448
    %1491 = vmatprep.subr.mxu0 0.0
    %1492 = vmatpush2.msra.mxu0 0.0
    %1493 = vmatprep.subr.mxu0 0.0
    %1494 = vmatpush2.msra.mxu0 0.0
    %1495 = vmatprep.subr.mxu0 0.0
    %1496 = vmatpush2.msra.mxu0 0.0
    %1497 = vmatprep.subr.mxu0 0.0
    %1498 = vmatpush2.msra.mxu0 0.0
    %1499 = vmatprep.subr.mxu0 0.0
    %1500 = vmatpush2.msra.mxu0 0.0
    %1501 = vmatprep.subr.mxu0 0.0
    %1502 = vmatpush2.msra.mxu0 0.0
    %1503 = vmatprep.subr.mxu0 0.0
    %1504 = vmatpush2.msra.mxu0 0.0
    %1505 = vmatprep.subr.mxu0 0.0
    %1506 = vmatpush2.msra.mxu0 0.0
    %1507 = vmatprep.subr.mxu0 0.0
    %1508 = vmatpush2.msra.mxu0 0.0
    %1509 = vmatprep.subr.mxu0 0.0
    %1510 = vmatpush2.msra.mxu0 0.0
    %1511 = vmatprep.subr.mxu0 0.0
    %1512 = vmatpush2.msra.mxu0 0.0
    %1513 = vmatprep.subr.mxu0 0.0
    %1514 = vmatpush2.msra.mxu0 0.0
    %1515 = vmatprep.subr.mxu0 0.0
    %1516 = vmatpush2.msra.mxu0 0.0
    %1517 = vmatprep.subr.mxu0 0.0
    %1518 = vmatpush2.msra.mxu0 0.0
    %1519 = vmatprep.subr.mxu0 0.0
    %1520 = vmatpush2.msra.mxu0 0.0
    %1521 = vmatprep.subr.mxu0 0.0
    %1522 = vmatpush2.msra.mxu0 0.0
    %1523 = vmatprep.mubr.f32.mxu0 0.0
    %1524 = vmatmul.mubr.f32.gmra.mxu0 %v1445
    %v1525 = vpop.f32.mrf.mxu0
    %v1526 = vadd.f32 0.0, %v1525
    %v1527 = vpop.f32.mrf.mxu0
    %v1528 = vadd.f32 0.0, %v1527
    %1529 = vdwg.mxu0
    %1530 = vmatprep.subr.mxu0 0.0
    %1531 = vmatpush1.msra.mxu0 0.0
    %1532 = vmatprep.subr.mxu0 0.0
    %1533 = vmatpush1.msra.mxu0 0.0
    %1534 = vmatprep.subr.mxu0 0.0
    %1535 = vmatpush1.msra.mxu0 0.0
    %1536 = vmatprep.subr.mxu0 0.0
    %1537 = vmatpush1.msra.mxu0 0.0
    %1538 = vmatprep.subr.mxu0 0.0
    %1539 = vmatpush1.msra.mxu0 0.0
    %1540 = vmatprep.subr.mxu0 0.0
    %1541 = vmatpush1.msra.mxu0 0.0
    %1542 = vmatprep.subr.mxu0 0.0
    %1543 = vmatpush1.msra.mxu0 0.0
    %1544 = vmatprep.subr.mxu0 0.0
    %1545 = vmatpush1.msra.mxu0 0.0
    %1546 = vmatprep.subr.mxu0 0.0
    %1547 = vmatpush1.msra.mxu0 0.0
    %1548 = vmatprep.subr.mxu0 0.0
    %1549 = vmatpush1.msra.mxu0 0.0
    %1550 = vmatprep.subr.mxu0 0.0
    %1551 = vmatpush1.msra.mxu0 0.0
    %1552 = vmatprep.subr.mxu0 0.0
    %1553 = vmatpush1.msra.mxu0 0.0
    %1554 = vmatprep.subr.mxu0 0.0
    %1555 = vmatpush1.msra.mxu0 0.0
    %1556 = vmatprep.subr.mxu0 0.0
    %1557 = vmatpush1.msra.mxu0 0.0
    %1558 = vmatprep.subr.mxu0 0.0
    %1559 = vmatpush1.msra.mxu0 0.0
    %1560 = vmatprep.subr.mxu0 %v1457
    %1561 = vmatpush1.msra.mxu0 %v1454
    %1562 = vmatprep.subr.mxu0 0.0
    %1563 = vmatpush2.msra.mxu0 0.0
    %1564 = vmatprep.subr.mxu0 0.0
    %1565 = vmatpush2.msra.mxu0 0.0
    %1566 = vmatprep.subr.mxu0 0.0
    %1567 = vmatpush2.msra.mxu0 0.0
    %1568 = vmatprep.subr.mxu0 0.0
    %1569 = vmatpush2.msra.mxu0 0.0
    %1570 = vmatprep.subr.mxu0 0.0
    %1571 = vmatpush2.msra.mxu0 0.0
    %1572 = vmatprep.subr.mxu0 0.0
    %1573 = vmatpush2.msra.mxu0 0.0
    %1574 = vmatprep.subr.mxu0 0.0
    %1575 = vmatpush2.msra.mxu0 0.0
    %1576 = vmatprep.subr.mxu0 0.0
    %1577 = vmatpush2.msra.mxu0 0.0
    %1578 = vmatprep.subr.mxu0 0.0
    %1579 = vmatpush2.msra.mxu0 0.0
    %1580 = vmatprep.subr.mxu0 0.0
    %1581 = vmatpush2.msra.mxu0 0.0
    %1582 = vmatprep.subr.mxu0 0.0
    %1583 = vmatpush2.msra.mxu0 0.0
    %1584 = vmatprep.subr.mxu0 0.0
    %1585 = vmatpush2.msra.mxu0 0.0
    %1586 = vmatprep.subr.mxu0 0.0
    %1587 = vmatpush2.msra.mxu0 0.0
    %1588 = vmatprep.subr.mxu0 0.0
    %1589 = vmatpush2.msra.mxu0 0.0
    %1590 = vmatprep.subr.mxu0 0.0
    %1591 = vmatpush2.msra.mxu0 0.0
    %1592 = vmatprep.subr.mxu0 0.0
    %1593 = vmatpush2.msra.mxu0 0.0
    %1594 = vmatprep.mubr.f32.mxu0 0.0
    %1595 = vmatmul.mubr.f32.gmra.mxu0 %v1445
    %v1596 = vpop.f32.mrf.mxu0
    %v1597 = vadd.f32 0.0, %v1596
    %v1598 = vpop.f32.mrf.mxu0
    %v1599 = vadd.f32 0.0, %v1598
    %1600 = vdwg.mxu0
    %v1601 = vadd.f32 %v1399, %v1526
    %v1602 = vadd.f32 %v1400, %v1528
    %v1603 = vadd.f32 %v1401, %v1597
    %v1604 = vadd.f32 %v1402, %v1599
    %1605 = vrot.lane.b32.xlu0 %v18, 94
    %v1606 = vpop.permute.xlu0 %1605
    %1607 = vrot.lane.b32.xlu0 %v22, 94
    %v1608 = vpop.permute.xlu0 %1607
    %1609 = vrot.lane.b32.xlu0 %v20, 94
    %v1610 = vpop.permute.xlu0 %1609
    %1611 = vrot.lane.b32.xlu0 %v25, 94
    %v1612 = vpop.permute.xlu0 %1611
    %vm1613 = vcmp.lt.s32.totalorder %v39, 94
    %v1614 = vsel %vm1613, %v1610, %v1612
    %v1615 = vsel %vm1613, %v1608, %v1610
    %v1616 = vsel %vm1613, %v1606, %v1608
    %v1617 = vsel %vm1613, %v1612, %v1606
    %vm1618 = vmand %vm1212, %vm445
    %v1619 = vsel %vm1618, 1.0, 0.0
    %v1621 = vlaneseq
    %v1622 = vshrl.u32 %v1621, 7
    %v1623 = vsub.s32 0, %v1622
    %v1624 = vrot.slane %v1619, %v1623
    %v1625 = vlaneseq
    %v1626 = vshrl.u32 %v1625, 7
    %v1627 = vsub.s32 1, %v1626
    %v1628 = vrot.slane %v1619, %v1627
    %v1629 = vlaneseq
    %v1630 = vshrl.u32 %v1629, 7
    %v1631 = vsub.s32 2, %v1630
    %v1632 = vrot.slane %v1619, %v1631
    %v1633 = vlaneseq
    %v1634 = vshrl.u32 %v1633, 7
    %v1635 = vsub.s32 3, %v1634
    %v1636 = vrot.slane %v1619, %v1635
    %v1641 = vmul.f32 %v1616, %v1624
    %v1642 = vmul.f32 %v1615, %v1628
    %v1643 = vmul.f32 %v1614, %v1632
    %v1644 = vmul.f32 %v1617, %v1636
    %s1645 = scalar_lea.vmem %s1, 64
    %v1646 = vld [vmem:[%s1645] sm:$0xff]
    %v1648 = vsel %vm116, %v1646, 0
    %v1651 = vsel %vm120, %v1641, 0
    %v1654 = vsel %vm120, %v1642, 0
    %v1657 = vsel %vm120, %v1643, 0
    %v1660 = vsel %vm120, %v1644, 0
    %1662 = vmatprep.subr.mxu0 0.0
    %1663 = vmatpush1.msra.mxu0 0.0
    %1664 = vmatprep.subr.mxu0 0.0
    %1665 = vmatpush1.msra.mxu0 0.0
    %1666 = vmatprep.subr.mxu0 0.0
    %1667 = vmatpush1.msra.mxu0 0.0
    %1668 = vmatprep.subr.mxu0 0.0
    %1669 = vmatpush1.msra.mxu0 0.0
    %1670 = vmatprep.subr.mxu0 0.0
    %1671 = vmatpush1.msra.mxu0 0.0
    %1672 = vmatprep.subr.mxu0 0.0
    %1673 = vmatpush1.msra.mxu0 0.0
    %1674 = vmatprep.subr.mxu0 0.0
    %1675 = vmatpush1.msra.mxu0 0.0
    %1676 = vmatprep.subr.mxu0 0.0
    %1677 = vmatpush1.msra.mxu0 0.0
    %1678 = vmatprep.subr.mxu0 0.0
    %1679 = vmatpush1.msra.mxu0 0.0
    %1680 = vmatprep.subr.mxu0 0.0
    %1681 = vmatpush1.msra.mxu0 0.0
    %1682 = vmatprep.subr.mxu0 0.0
    %1683 = vmatpush1.msra.mxu0 0.0
    %1684 = vmatprep.subr.mxu0 0.0
    %1685 = vmatpush1.msra.mxu0 0.0
    %1686 = vmatprep.subr.mxu0 0.0
    %1687 = vmatpush1.msra.mxu0 0.0
    %1688 = vmatprep.subr.mxu0 0.0
    %1689 = vmatpush1.msra.mxu0 0.0
    %1690 = vmatprep.subr.mxu0 0.0
    %1691 = vmatpush1.msra.mxu0 0.0
    %1692 = vmatprep.subr.mxu0 %v1654
    %1693 = vmatpush1.msra.mxu0 %v1651
    %1694 = vmatprep.subr.mxu0 0.0
    %1695 = vmatpush2.msra.mxu0 0.0
    %1696 = vmatprep.subr.mxu0 0.0
    %1697 = vmatpush2.msra.mxu0 0.0
    %1698 = vmatprep.subr.mxu0 0.0
    %1699 = vmatpush2.msra.mxu0 0.0
    %1700 = vmatprep.subr.mxu0 0.0
    %1701 = vmatpush2.msra.mxu0 0.0
    %1702 = vmatprep.subr.mxu0 0.0
    %1703 = vmatpush2.msra.mxu0 0.0
    %1704 = vmatprep.subr.mxu0 0.0
    %1705 = vmatpush2.msra.mxu0 0.0
    %1706 = vmatprep.subr.mxu0 0.0
    %1707 = vmatpush2.msra.mxu0 0.0
    %1708 = vmatprep.subr.mxu0 0.0
    %1709 = vmatpush2.msra.mxu0 0.0
    %1710 = vmatprep.subr.mxu0 0.0
    %1711 = vmatpush2.msra.mxu0 0.0
    %1712 = vmatprep.subr.mxu0 0.0
    %1713 = vmatpush2.msra.mxu0 0.0
    %1714 = vmatprep.subr.mxu0 0.0
    %1715 = vmatpush2.msra.mxu0 0.0
    %1716 = vmatprep.subr.mxu0 0.0
    %1717 = vmatpush2.msra.mxu0 0.0
    %1718 = vmatprep.subr.mxu0 0.0
    %1719 = vmatpush2.msra.mxu0 0.0
    %1720 = vmatprep.subr.mxu0 0.0
    %1721 = vmatpush2.msra.mxu0 0.0
    %1722 = vmatprep.subr.mxu0 0.0
    %1723 = vmatpush2.msra.mxu0 0.0
    %1724 = vmatprep.subr.mxu0 0.0
    %1725 = vmatpush2.msra.mxu0 0.0
    %1726 = vmatprep.mubr.f32.mxu0 0.0
    %1727 = vmatmul.mubr.f32.gmra.mxu0 %v1648
    %v1728 = vpop.f32.mrf.mxu0
    %v1729 = vadd.f32 0.0, %v1728
    %v1730 = vpop.f32.mrf.mxu0
    %v1731 = vadd.f32 0.0, %v1730
    %1732 = vdwg.mxu0
    %1733 = vmatprep.subr.mxu0 0.0
    %1734 = vmatpush1.msra.mxu0 0.0
    %1735 = vmatprep.subr.mxu0 0.0
    %1736 = vmatpush1.msra.mxu0 0.0
    %1737 = vmatprep.subr.mxu0 0.0
    %1738 = vmatpush1.msra.mxu0 0.0
    %1739 = vmatprep.subr.mxu0 0.0
    %1740 = vmatpush1.msra.mxu0 0.0
    %1741 = vmatprep.subr.mxu0 0.0
    %1742 = vmatpush1.msra.mxu0 0.0
    %1743 = vmatprep.subr.mxu0 0.0
    %1744 = vmatpush1.msra.mxu0 0.0
    %1745 = vmatprep.subr.mxu0 0.0
    %1746 = vmatpush1.msra.mxu0 0.0
    %1747 = vmatprep.subr.mxu0 0.0
    %1748 = vmatpush1.msra.mxu0 0.0
    %1749 = vmatprep.subr.mxu0 0.0
    %1750 = vmatpush1.msra.mxu0 0.0
    %1751 = vmatprep.subr.mxu0 0.0
    %1752 = vmatpush1.msra.mxu0 0.0
    %1753 = vmatprep.subr.mxu0 0.0
    %1754 = vmatpush1.msra.mxu0 0.0
    %1755 = vmatprep.subr.mxu0 0.0
    %1756 = vmatpush1.msra.mxu0 0.0
    %1757 = vmatprep.subr.mxu0 0.0
    %1758 = vmatpush1.msra.mxu0 0.0
    %1759 = vmatprep.subr.mxu0 0.0
    %1760 = vmatpush1.msra.mxu0 0.0
    %1761 = vmatprep.subr.mxu0 0.0
    %1762 = vmatpush1.msra.mxu0 0.0
    %1763 = vmatprep.subr.mxu0 %v1660
    %1764 = vmatpush1.msra.mxu0 %v1657
    %1765 = vmatprep.subr.mxu0 0.0
    %1766 = vmatpush2.msra.mxu0 0.0
    %1767 = vmatprep.subr.mxu0 0.0
    %1768 = vmatpush2.msra.mxu0 0.0
    %1769 = vmatprep.subr.mxu0 0.0
    %1770 = vmatpush2.msra.mxu0 0.0
    %1771 = vmatprep.subr.mxu0 0.0
    %1772 = vmatpush2.msra.mxu0 0.0
    %1773 = vmatprep.subr.mxu0 0.0
    %1774 = vmatpush2.msra.mxu0 0.0
    %1775 = vmatprep.subr.mxu0 0.0
    %1776 = vmatpush2.msra.mxu0 0.0
    %1777 = vmatprep.subr.mxu0 0.0
    %1778 = vmatpush2.msra.mxu0 0.0
    %1779 = vmatprep.subr.mxu0 0.0
    %1780 = vmatpush2.msra.mxu0 0.0
    %1781 = vmatprep.subr.mxu0 0.0
    %1782 = vmatpush2.msra.mxu0 0.0
    %1783 = vmatprep.subr.mxu0 0.0
    %1784 = vmatpush2.msra.mxu0 0.0
    %1785 = vmatprep.subr.mxu0 0.0
    %1786 = vmatpush2.msra.mxu0 0.0
    %1787 = vmatprep.subr.mxu0 0.0
    %1788 = vmatpush2.msra.mxu0 0.0
    %1789 = vmatprep.subr.mxu0 0.0
    %1790 = vmatpush2.msra.mxu0 0.0
    %1791 = vmatprep.subr.mxu0 0.0
    %1792 = vmatpush2.msra.mxu0 0.0
    %1793 = vmatprep.subr.mxu0 0.0
    %1794 = vmatpush2.msra.mxu0 0.0
    %1795 = vmatprep.subr.mxu0 0.0
    %1796 = vmatpush2.msra.mxu0 0.0
    %1797 = vmatprep.mubr.f32.mxu0 0.0
    %1798 = vmatmul.mubr.f32.gmra.mxu0 %v1648
    %v1799 = vpop.f32.mrf.mxu0
    %v1800 = vadd.f32 0.0, %v1799
    %v1801 = vpop.f32.mrf.mxu0
    %v1802 = vadd.f32 0.0, %v1801
    %1803 = vdwg.mxu0
    %v1804 = vadd.f32 %v1601, %v1729
    %v1805 = vadd.f32 %v1602, %v1731
    %v1806 = vadd.f32 %v1603, %v1800
    %v1807 = vadd.f32 %v1604, %v1802
    %v1808 = vld [vmem:[%s2] sm:$0xff]
    %1810 = vset.pattern.permute.xlu0 0
    %1811 = vperm.xlu0 %1810, %v1808
    %v1812 = vpop.permute.xlu0 %1811
    %v1814 = vadd.f32 %v1804, %v1812
    %v1815 = vadd.f32 %v1805, %v1812
    %v1816 = vadd.f32 %v1806, %v1812
    %v1817 = vadd.f32 %v1807, %v1812
    %1818 = vst [vmem:[#allocation2] sm:$0xff] %v1814
    %1819 = vst [vmem:[#allocation2 + $0x8] sm:$0xff] %v1815
    %s1820 = scalar_lea.vmem [#allocation2], 16
    %1821 = vst [vmem:[%s1820] sm:$0xff] %v1816
    %1822 = vst [vmem:[%s1820 + $0x8] sm:$0xff] %v1817
    // Predicated region
    $region18: #{tpu_custom_call.1} parent=1 // pred_check
      _
    $region19: #{tpu_custom_call.1} parent=1 // pred_check_branch
      %1824 = sbr.rel (0) target = $region21
    $region20: #{tpu_custom_call.1} parent=1 // pred_region
      %s1826 = ssub.s32 512, 512
      %1827 = vsyncadd [#allocation3], %s1826
      %s1828 = sshll.u32 [#allocation2], 4
      %s1829 = int_to_ptr.vmem [resolvable:$true] %s1828
      %1834 = dma.vmem_to_hbm [thread:$0]  %s1829, 512, %s4, [#allocation3], 256, 256, 16
    $region21: #{tpu_custom_call.1} parent=1 // pred_fallthru
      _
    // Predicated region
    $region22: #{tpu_custom_call.1} parent=1 // pred_check
      _
    $region23: #{tpu_custom_call.1} parent=1 // pred_check_branch
      %1836 = sbr.rel (0) target = $region25
    $region24: #{tpu_custom_call.1} parent=1 // pred_region
      %1837 = dma.done [#allocation3], 512
    $region25: #{tpu_custom_call.1} parent=1 // pred_fallthru
      _
    %1838 = vsyncpa [#allocation3], 1

</llo_original>
